<compile_context>
chip_gen: v6e
topology: v6e:2x2x1
jax: 0.10.0
libtpu: 0.0.40
codegen_flags: <defaults>
</compile_context>

<pallas_src>
from collections import namedtuple

import numpy as np
import jax
import jax.numpy as jnp
from jax import lax
from jax.experimental import pallas as pl
from jax.experimental.pallas import tpu as pltpu

CONV_PAD = 2        # fixed `padding = 2` in Child.__init__
POOL_PAD = 1        # fixed MaxPool2d padding
GS = 128            # lane stride of one pooled-column group (A | B layout)

LayerParam = namedtuple("LayerParam", "input_dim output_dim kernel_size stride pooling_size")
CONFIG = {
    "layer0": LayerParam(4, 8, 3, 1, 2),
    "layer1": LayerParam(8, 8, 3, 1, 2),
}
NUM_CLASSES = 10
N_BATCH = 2
H_IN = 16


def _conv_out(h, k, s, pad=CONV_PAD, dil=1):
    return (h + 2 * pad - dil * (k - 1) - 1) // s + 1


def _pool_out(h, k, s, pad=POOL_PAD):
    return (h + 2 * pad - k) // s + 1


def _round8(x):
    return (x + 7) & ~7


def _wo_to_group(wo):
    # conv column wo -> (group, j): pooled col j = max(conv col 2j-1 [A], conv col 2j [B])
    return (0, (wo + 1) // 2) if wo % 2 == 1 else (1, wo // 2)


# -----------------------------------------------------------------------------
# Host-side (one-time) weight re-layouts.
# -----------------------------------------------------------------------------
def build_conv_matrix(w_hwio, b, w_in, tap_rows):
    """Wide-K column-Toeplitz conv matrix (KH*tap_rows, 256) + bias row.

    Row kh*tap_rows + wi*cin + c multiplies the input pixel at (h_out-2+kh, wi, c).
    Columns are in W-pool pair order: group A (lanes 0..127) holds conv col 2j-1,
    group B (lanes 128..255) holds conv col 2j, at lane grp*128 + j*cout + co.
    Conv W padding and the fake pool-pad columns are folded in (zero cols + zero
    bias -> stay 0 after ReLU, a valid identity for max with >=0 data)."""
    KH, KW, cin, cout = np.asarray(w_hwio).shape
    w_out = _conv_out(w_in, KH, 1)
    mats = np.zeros((KH, tap_rows, 2 * GS), np.float32)
    brow = np.zeros((1, 2 * GS), np.float32)
    w_np = np.asarray(w_hwio, np.float32)
    b_np = np.asarray(b, np.float32)
    for wo in range(w_out):
        grp, j = _wo_to_group(wo)
        c0 = grp * GS + j * cout
        brow[0, c0:c0 + cout] = b_np          # fake (out-of-range) pool cols keep bias 0
        for kh in range(KH):
            for kw in range(KW):
                wi = wo + kw - CONV_PAD
                if 0 <= wi < w_in:
                    mats[kh, wi * cin:(wi + 1) * cin, c0:c0 + cout] = w_np[kh, kw]
    return jnp.asarray(mats.reshape(KH * tap_rows, 2 * GS)), jnp.asarray(brow)


def build_fc1(w1, p1, cout):
    """Permute fc1 rows from torch NCHW-flatten order to the kernel's fc1-LHS
    lane order (lane = 128*h + w*cout + c), as a single (p1*128, 50) matrix."""
    w1_np = np.asarray(w1, np.float32)              # (cout*p1*p1, F) rows: c*p1*p1 + h*p1 + w
    f_out = w1_np.shape[1]
    base = w1_np.reshape(cout, p1, p1, f_out).transpose(1, 2, 0, 3).reshape(p1, p1 * cout, f_out)
    out = np.zeros((p1, GS, f_out), np.float32)
    out[:, :p1 * cout, :] = base
    return jnp.asarray(out.reshape(p1 * GS, f_out))


# -----------------------------------------------------------------------------
# Fused kernel: [conv+ReLU+pool] x2 -> flatten -> fc1 -> fc2 -> log_softmax
# -----------------------------------------------------------------------------
def _make_fused_kernel(n, ksize, cin0, hc0, p0, hc1, p1, slot0, slot1):
    L0 = H_IN * cin0                        # lanes per tap region, layer 0 (64)

    def kernel(x_ref, wk0_ref, b0_ref, wk1_ref, b1_ref,
               w1_ref, b1f_ref, w2_ref, b2f_ref, o_ref,
               sxw0, cst0, sxw1, cst1, fcin):
        f32 = jnp.float32

        # --------------- layer 0: conv(3x3, pad=2) as ONE wide-K matmul -------------
        # sxw0 row R, tap-kh lanes [kh*L0,(kh+1)*L0) hold input row (R - slot0*i - 2 + kh).
        for i in range(n):
            r0 = slot0 * i
            # zero only the H-pad rows the valid output rows read (ReLU >= 0 identity)
            sxw0[pl.ds(r0, 2), :] = jnp.zeros((2, ksize * L0), f32)
            sxw0[pl.ds(r0 + H_IN, 2), :] = jnp.zeros((2, ksize * L0), f32)
            xi = x_ref[pl.ds(H_IN * i, H_IN), :]                        # (16, 64)
            for kh in range(ksize):
                sxw0[pl.ds(r0 + CONV_PAD - kh, H_IN), pl.ds(L0 * kh, L0)] = xi
        acc = jnp.dot(sxw0[...], wk0_ref[...], preferred_element_type=f32) + b0_ref[...]
        acc = jnp.maximum(acc, 0.0)                                     # bias + ReLU
        wp = jnp.maximum(acc[:, 0:GS], acc[:, GS:2 * GS])               # W-pool (lane aligned)

        # ------ layer-0 H-pool (pairs 2j-1, 2j) + staging of layer-1 wide-K LHS -----
        for i in range(n):
            cb = slot0 * i
            cst0[pl.ds(cb, 1), :] = jnp.zeros((1, GS), f32)             # conv row -1 pad
            cst0[pl.ds(cb + 1 + hc0, 1), :] = jnp.zeros((1, GS), f32)   # conv row hc0 pad
            cst0[pl.ds(cb + 1, hc0), :] = wp[slot0 * i:slot0 * i + hc0]
        for i in range(n):
            cb, r1 = slot0 * i, slot1 * i
            pooled = jnp.maximum(cst0[pl.ds(cb, p0, 2), :],
                                 cst0[pl.ds(cb + 1, p0, 2), :])         # (p0, 128)
            sxw1[pl.ds(r1, 2), :] = jnp.zeros((2, ksize * GS), f32)
            sxw1[pl.ds(r1 + p0, 2), :] = jnp.zeros((2, ksize * GS), f32)
            for kh in range(ksize):
                sxw1[pl.ds(r1 + CONV_PAD - kh, p0), pl.ds(GS * kh, GS)] = pooled

        # --------------- layer 1: conv(3x3, pad=2) as ONE wide-K matmul -------------
        acc = jnp.dot(sxw1[...], wk1_ref[...], preferred_element_type=f32) + b1_ref[...]
        acc = jnp.maximum(acc, 0.0)
        wp = jnp.maximum(acc[:, 0:GS], acc[:, GS:2 * GS])

        # ------ layer-1 H-pool + NCHW flatten into ONE (n, p1*128) fc1 LHS ----------
        for i in range(n):
            cb = slot1 * i
            cst1[pl.ds(cb, 1), :] = jnp.zeros((1, GS), f32)
            cst1[pl.ds(cb + 1 + hc1, 1), :] = jnp.zeros((1, GS), f32)
            cst1[pl.ds(cb + 1, hc1), :] = wp[slot1 * i:slot1 * i + hc1]
        for i in range(n):
            cb = slot1 * i
            pooled = jnp.maximum(cst1[pl.ds(cb, p1, 2), :],
                                 cst1[pl.ds(cb + 1, p1, 2), :])         # (p1, 128)
            for h in range(p1):
                fcin[pl.ds(i, 1), pl.ds(GS * h, GS)] = pooled[h:h + 1, :]

        # --------------- fc1 -> fc2 -> log_softmax (single wide-K dots) -------------
        h1 = jnp.dot(fcin[...], w1_ref[...], preferred_element_type=f32) + b1f_ref[...]
        logits = jnp.dot(h1, w2_ref[...], preferred_element_type=f32) + b2f_ref[...]
        s = logits - jnp.max(logits, axis=-1, keepdims=True)
        lse = jnp.log(jnp.sum(jnp.exp(s), axis=-1, keepdims=True))
        o_ref[...] = s - lse

    return kernel


def make_forward(conv_weights, fc_weights):
    (w0, b0), (w1c, b1c) = conv_weights
    w1fc, b1fc, w2fc, b2fc = fc_weights
    lp0, lp1 = CONFIG["layer0"], CONFIG["layer1"]

    hc0 = _conv_out(H_IN, lp0.kernel_size, lp0.stride)      # 18
    p0 = _pool_out(hc0, lp0.pooling_size, 2)                # 10
    hc1 = _conv_out(p0, lp1.kernel_size, lp1.stride)        # 12
    p1 = _pool_out(hc1, lp1.pooling_size, 2)                # 7

    slot0 = _round8(hc0 + 2)                                # 24 (8-aligned per-image block)
    slot1 = _round8(hc1 + 2)                                # 16
    L0 = H_IN * lp0.input_dim                               # 64

    # one-time weight re-layouts (conv padding / pool pairing / NCHW flatten folded in)
    wk0, b0row = build_conv_matrix(w0, b0, H_IN, L0)        # (192, 256)
    wk1, b1row = build_conv_matrix(w1c, b1c, p0, GS)        # (384, 256)
    w1w = build_fc1(w1fc, p1, lp1.output_dim)               # (896, 50)
    b1f = jnp.asarray(b1fc, jnp.float32).reshape(1, -1)
    w2f = jnp.asarray(w2fc, jnp.float32)
    b2f = jnp.asarray(b2fc, jnp.float32).reshape(1, -1)

    kernel = _make_fused_kernel(N_BATCH, lp0.kernel_size, lp0.input_dim,
                                hc0, p0, hc1, p1, slot0, slot1)

    fused = pl.pallas_call(
        kernel,
        out_shape=jax.ShapeDtypeStruct((N_BATCH, NUM_CLASSES), jnp.float32),
        scratch_shapes=[
            pltpu.VMEM((N_BATCH * slot0, lp0.kernel_size * L0), jnp.float32),  # layer-0 wide LHS
            pltpu.VMEM((N_BATCH * slot0, GS), jnp.float32),                    # layer-0 pool stage
            pltpu.VMEM((N_BATCH * slot1, lp1.kernel_size * GS), jnp.float32),  # layer-1 wide LHS
            pltpu.VMEM((N_BATCH * slot1, GS), jnp.float32),                    # layer-1 pool stage
            pltpu.VMEM((N_BATCH, p1 * GS), jnp.float32),                       # fc1 LHS (n, 896)
        ],
    )

    @jax.jit
    def forward(x_nchw):
        # NCHW -> NHWC -> rows = (n, h), lanes = w*Cin + c
        x2d = jnp.transpose(x_nchw, (0, 2, 3, 1)).reshape(N_BATCH * H_IN, H_IN * lp0.input_dim)
        return fused(x2d, wk0, b0row, wk1, b1row, w1w, b1f, w2f, b2f)

    return forward


# -----------------------------------------------------------------------------
# Plain-JAX reference (mirrors the torch module exactly) for verification.
# -----------------------------------------------------------------------------
def reference_forward(x_nchw, conv_weights, fc_weights):
    x = jnp.transpose(x_nchw, (0, 2, 3, 1))
    for lp, (w, b) in zip(CONFIG.values(), conv_weights):
        x = lax.conv_general_dilated(
            x, w, window_strides=(lp.stride, lp.stride),
            padding=[(CONV_PAD, CONV_PAD)] * 2,
            dimension_numbers=("NHWC", "HWIO", "NHWC"),
            precision=lax.Precision.HIGHEST) + b
        x = jnp.maximum(x, 0.0)
        x = lax.reduce_window(
            x, -jnp.inf, lax.max,
            (1, lp.pooling_size, lp.pooling_size, 1),
            (1, lp.pooling_size, lp.pooling_size, 1),
            [(0, 0), (POOL_PAD, POOL_PAD), (POOL_PAD, POOL_PAD), (0, 0)])
    x = jnp.transpose(x, (0, 3, 1, 2)).reshape(x.shape[0], -1)   # torch x.view(N, -1)
    w1, b1, w2, b2 = fc_weights
    logits = jnp.dot(jnp.dot(x, w1, precision=lax.Precision.HIGHEST) + b1,
                     w2, precision=lax.Precision.HIGHEST) + b2
    return jax.nn.log_softmax(logits, axis=1)


if __name__ == "__main__":
    key = jax.random.PRNGKey(0)
    ks = jax.random.split(key, 10)
    x = jax.random.normal(ks[0], (N_BATCH, CONFIG["layer0"].input_dim, H_IN, H_IN), jnp.float32)

    conv_weights = []
    for i, lp in enumerate(CONFIG.values()):
        w = 0.1 * jax.random.normal(
            ks[1 + 2 * i], (lp.kernel_size, lp.kernel_size, lp.input_dim, lp.output_dim),
            jnp.float32)
        b = 0.1 * jax.random.normal(ks[2 + 2 * i], (lp.output_dim,), jnp.float32)
        conv_weights.append((w, b))

    # conv tower output feature dim, replicating the module's shape arithmetic: 7*7*8 = 392
    hw, last_out = H_IN, 0
    for lp in CONFIG.values():
        hw = _conv_out(hw, lp.kernel_size, lp.stride)
        hw = _pool_out(hw, lp.pooling_size, 2)
        last_out = lp.output_dim
    f_dim = hw * hw * last_out

    w1 = 0.05 * jax.random.normal(ks[5], (f_dim, 50), jnp.float32)
    b1 = 0.05 * jax.random.normal(ks[6], (50,), jnp.float32)
    w2 = 0.10 * jax.random.normal(ks[7], (50, NUM_CLASSES), jnp.float32)
    b2 = 0.10 * jax.random.normal(ks[8], (NUM_CLASSES,), jnp.float32)
    fc_weights = (w1, b1, w2, b2)

    forward = make_forward(conv_weights, fc_weights)
    out = forward(x)
    jax.block_until_ready(out)
    assert out.shape == (N_BATCH, NUM_CLASSES)

    ref = reference_forward(x, conv_weights, fc_weights)
    np.testing.assert_allclose(np.asarray(out), np.asarray(ref), rtol=2e-3, atol=2e-3)

    # TODO(synk): the module's SGD optimizer / training step is not part of forward and
    # is intentionally not implemented.
    print("KERNEL_OK")
</pallas_src>

<mosaic_0001>
module attributes {stable_mosaic.version = 11 : i64} {
  func.func @kernel(%arg0: memref<32x64xf32, #tpu.memory_space<vmem>>, %arg1: memref<192x256xf32, #tpu.memory_space<vmem>>, %arg2: memref<1x256xf32, #tpu.memory_space<vmem>>, %arg3: memref<384x256xf32, #tpu.memory_space<vmem>>, %arg4: memref<1x256xf32, #tpu.memory_space<vmem>>, %arg5: memref<896x50xf32, #tpu.memory_space<vmem>>, %arg6: memref<1x50xf32, #tpu.memory_space<vmem>>, %arg7: memref<50x10xf32, #tpu.memory_space<vmem>>, %arg8: memref<1x10xf32, #tpu.memory_space<vmem>>, %arg9: memref<2x10xf32, #tpu.memory_space<vmem>>, %arg10: memref<48x192xf32, #tpu.memory_space<vmem>>, %arg11: memref<48x128xf32, #tpu.memory_space<vmem>>, %arg12: memref<32x384xf32, #tpu.memory_space<vmem>>, %arg13: memref<32x128xf32, #tpu.memory_space<vmem>>, %arg14: memref<2x896xf32, #tpu.memory_space<vmem>>) attributes {dimension_semantics = [], scalar_prefetch = 0 : i64, scratch_operands = 5 : i64, tpu.core_type = #tpu.core_type<tc>} {
    %cst = arith.constant 0.000000e+00 : f32
    %0 = vector.broadcast %cst : f32 to vector<2x192xf32>
    %c0 = arith.constant 0 : index
    %c0_0 = arith.constant 0 : index
    %1 = vector.load %arg10[%c0, %c0_0] : memref<48x192xf32, #tpu.memory_space<vmem>>, vector<2x192xf32>
    tpu.vector_store %arg10[%c0, %c0_0], %0 {strides = array<i32>} : memref<48x192xf32, #tpu.memory_space<vmem>>, vector<2x192xf32>,
    %cst_1 = arith.constant 0.000000e+00 : f32
    %2 = vector.broadcast %cst_1 : f32 to vector<2x192xf32>
    %c16 = arith.constant 16 : index
    %c0_2 = arith.constant 0 : index
    %3 = vector.load %arg10[%c16, %c0_2] : memref<48x192xf32, #tpu.memory_space<vmem>>, vector<2x192xf32>
    tpu.vector_store %arg10[%c16, %c0_2], %2 {strides = array<i32>} : memref<48x192xf32, #tpu.memory_space<vmem>>, vector<2x192xf32>,
    %c0_3 = arith.constant 0 : index
    %c0_4 = arith.constant 0 : index
    %4 = vector.load %arg0[%c0_3, %c0_4] : memref<32x64xf32, #tpu.memory_space<vmem>>, vector<16x64xf32>
    %c2 = arith.constant 2 : index
    %c0_5 = arith.constant 0 : index
    %5 = vector.load %arg10[%c2, %c0_5] : memref<48x192xf32, #tpu.memory_space<vmem>>, vector<16x64xf32>
    tpu.vector_store %arg10[%c2, %c0_5], %4 {strides = array<i32>} : memref<48x192xf32, #tpu.memory_space<vmem>>, vector<16x64xf32>,
    %c1 = arith.constant 1 : index
    %c64 = arith.constant 64 : index
    %6 = vector.load %arg10[%c1, %c64] : memref<48x192xf32, #tpu.memory_space<vmem>>, vector<16x64xf32>
    tpu.vector_store %arg10[%c1, %c64], %4 {strides = array<i32>} : memref<48x192xf32, #tpu.memory_space<vmem>>, vector<16x64xf32>,
    %c0_6 = arith.constant 0 : index
    %c128 = arith.constant 128 : index
    %7 = vector.load %arg10[%c0_6, %c128] : memref<48x192xf32, #tpu.memory_space<vmem>>, vector<16x64xf32>
    tpu.vector_store %arg10[%c0_6, %c128], %4 {strides = array<i32>} : memref<48x192xf32, #tpu.memory_space<vmem>>, vector<16x64xf32>,
    %cst_7 = arith.constant 0.000000e+00 : f32
    %8 = vector.broadcast %cst_7 : f32 to vector<2x192xf32>
    %c24 = arith.constant 24 : index
    %c0_8 = arith.constant 0 : index
    %9 = vector.load %arg10[%c24, %c0_8] : memref<48x192xf32, #tpu.memory_space<vmem>>, vector<2x192xf32>
    tpu.vector_store %arg10[%c24, %c0_8], %8 {strides = array<i32>} : memref<48x192xf32, #tpu.memory_space<vmem>>, vector<2x192xf32>,
    %cst_9 = arith.constant 0.000000e+00 : f32
    %10 = vector.broadcast %cst_9 : f32 to vector<2x192xf32>
    %c40 = arith.constant 40 : index
    %c0_10 = arith.constant 0 : index
    %11 = vector.load %arg10[%c40, %c0_10] : memref<48x192xf32, #tpu.memory_space<vmem>>, vector<2x192xf32>
    tpu.vector_store %arg10[%c40, %c0_10], %10 {strides = array<i32>} : memref<48x192xf32, #tpu.memory_space<vmem>>, vector<2x192xf32>,
    %c16_11 = arith.constant 16 : index
    %c0_12 = arith.constant 0 : index
    %12 = vector.load %arg0[%c16_11, %c0_12] : memref<32x64xf32, #tpu.memory_space<vmem>>, vector<16x64xf32>
    %c26 = arith.constant 26 : index
    %c0_13 = arith.constant 0 : index
    %13 = vector.load %arg10[%c26, %c0_13] : memref<48x192xf32, #tpu.memory_space<vmem>>, vector<16x64xf32>
    tpu.vector_store %arg10[%c26, %c0_13], %12 {strides = array<i32>} : memref<48x192xf32, #tpu.memory_space<vmem>>, vector<16x64xf32>,
    %c25 = arith.constant 25 : index
    %c64_14 = arith.constant 64 : index
    %14 = vector.load %arg10[%c25, %c64_14] : memref<48x192xf32, #tpu.memory_space<vmem>>, vector<16x64xf32>
    tpu.vector_store %arg10[%c25, %c64_14], %12 {strides = array<i32>} : memref<48x192xf32, #tpu.memory_space<vmem>>, vector<16x64xf32>,
    %c24_15 = arith.constant 24 : index
    %c128_16 = arith.constant 128 : index
    %15 = vector.load %arg10[%c24_15, %c128_16] : memref<48x192xf32, #tpu.memory_space<vmem>>, vector<16x64xf32>
    tpu.vector_store %arg10[%c24_15, %c128_16], %12 {strides = array<i32>} : memref<48x192xf32, #tpu.memory_space<vmem>>, vector<16x64xf32>,
    %c0_17 = arith.constant 0 : index
    %c0_18 = arith.constant 0 : index
    %16 = vector.load %arg10[%c0_17, %c0_18] : memref<48x192xf32, #tpu.memory_space<vmem>>, vector<48x192xf32>
    %c0_19 = arith.constant 0 : index
    %c0_20 = arith.constant 0 : index
    %17 = vector.load %arg1[%c0_19, %c0_20] : memref<192x256xf32, #tpu.memory_space<vmem>>, vector<192x256xf32>
    %cst_21 = arith.constant dense<0.000000e+00> : vector<48x256xf32>
    %18 = tpu.matmul %16, %17, %cst_21 {dimension_numbers = #tpu.dot_dimension_numbers<[1], [0], [0], [1], [0, 0, 1, 1], [], []>} : vector<48x192xf32>, vector<192x256xf32>, vector<48x256xf32> -> vector<48x256xf32>
    %c0_22 = arith.constant 0 : index
    %c0_23 = arith.constant 0 : index
    %19 = vector.load %arg2[%c0_22, %c0_23] : memref<1x256xf32, #tpu.memory_space<vmem>>, vector<1x256xf32>
    %20 = vector.broadcast %19 : vector<1x256xf32> to vector<48x256xf32>
    %21 = arith.addf %18, %20 : vector<48x256xf32>
    %cst_24 = arith.constant 0.000000e+00 : f32
    %22 = vector.broadcast %cst_24 : f32 to vector<48x256xf32>
    %23 = arith.maximumf %21, %22 : vector<48x256xf32>
    %24 = vector.extract_strided_slice %23 {offsets = [0, 0], sizes = [48, 128], strides = [1, 1]} : vector<48x256xf32> to vector<48x128xf32>
    %25 = vector.extract_strided_slice %23 {offsets = [0, 128], sizes = [48, 128], strides = [1, 1]} : vector<48x256xf32> to vector<48x128xf32>
    %26 = arith.maximumf %24, %25 : vector<48x128xf32>
    %cst_25 = arith.constant 0.000000e+00 : f32
    %27 = vector.broadcast %cst_25 : f32 to vector<1x128xf32>
    %c0_26 = arith.constant 0 : index
    %c0_27 = arith.constant 0 : index
    %28 = vector.load %arg11[%c0_26, %c0_27] : memref<48x128xf32, #tpu.memory_space<vmem>>, vector<1x128xf32>
    tpu.vector_store %arg11[%c0_26, %c0_27], %27 {strides = array<i32>} : memref<48x128xf32, #tpu.memory_space<vmem>>, vector<1x128xf32>,
    %cst_28 = arith.constant 0.000000e+00 : f32
    %29 = vector.broadcast %cst_28 : f32 to vector<1x128xf32>
    %c19 = arith.constant 19 : index
    %c0_29 = arith.constant 0 : index
    %30 = vector.load %arg11[%c19, %c0_29] : memref<48x128xf32, #tpu.memory_space<vmem>>, vector<1x128xf32>
    tpu.vector_store %arg11[%c19, %c0_29], %29 {strides = array<i32>} : memref<48x128xf32, #tpu.memory_space<vmem>>, vector<1x128xf32>,
    %31 = vector.extract_strided_slice %26 {offsets = [0, 0], sizes = [18, 128], strides = [1, 1]} : vector<48x128xf32> to vector<18x128xf32>
    %c1_30 = arith.constant 1 : index
    %c0_31 = arith.constant 0 : index
    %32 = vector.load %arg11[%c1_30, %c0_31] : memref<48x128xf32, #tpu.memory_space<vmem>>, vector<18x128xf32>
    tpu.vector_store %arg11[%c1_30, %c0_31], %31 {strides = array<i32>} : memref<48x128xf32, #tpu.memory_space<vmem>>, vector<18x128xf32>,
    %cst_32 = arith.constant 0.000000e+00 : f32
    %33 = vector.broadcast %cst_32 : f32 to vector<1x128xf32>
    %c24_33 = arith.constant 24 : index
    %c0_34 = arith.constant 0 : index
    %34 = vector.load %arg11[%c24_33, %c0_34] : memref<48x128xf32, #tpu.memory_space<vmem>>, vector<1x128xf32>
    tpu.vector_store %arg11[%c24_33, %c0_34], %33 {strides = array<i32>} : memref<48x128xf32, #tpu.memory_space<vmem>>, vector<1x128xf32>,
    %cst_35 = arith.constant 0.000000e+00 : f32
    %35 = vector.broadcast %cst_35 : f32 to vector<1x128xf32>
    %c43 = arith.constant 43 : index
    %c0_36 = arith.constant 0 : index
    %36 = vector.load %arg11[%c43, %c0_36] : memref<48x128xf32, #tpu.memory_space<vmem>>, vector<1x128xf32>
    tpu.vector_store %arg11[%c43, %c0_36], %35 {strides = array<i32>} : memref<48x128xf32, #tpu.memory_space<vmem>>, vector<1x128xf32>,
    %37 = vector.extract_strided_slice %26 {offsets = [24, 0], sizes = [18, 128], strides = [1, 1]} : vector<48x128xf32> to vector<18x128xf32>
    %c25_37 = arith.constant 25 : index
    %c0_38 = arith.constant 0 : index
    %38 = vector.load %arg11[%c25_37, %c0_38] : memref<48x128xf32, #tpu.memory_space<vmem>>, vector<18x128xf32>
    tpu.vector_store %arg11[%c25_37, %c0_38], %37 {strides = array<i32>} : memref<48x128xf32, #tpu.memory_space<vmem>>, vector<18x128xf32>,
    %c0_39 = arith.constant 0 : index
    %c0_40 = arith.constant 0 : index
    %39 = tpu.strided_load %arg11[%c0_39, %c0_40] {strides = array<i32: 2, 1>} : memref<48x128xf32, #tpu.memory_space<vmem>>, vector<10x128xf32>
    %c1_41 = arith.constant 1 : index
    %c0_42 = arith.constant 0 : index
    %40 = tpu.strided_load %arg11[%c1_41, %c0_42] {strides = array<i32: 2, 1>} : memref<48x128xf32, #tpu.memory_space<vmem>>, vector<10x128xf32>
    %41 = arith.maximumf %39, %40 : vector<10x128xf32>
    %cst_43 = arith.constant 0.000000e+00 : f32
    %42 = vector.broadcast %cst_43 : f32 to vector<2x384xf32>
    %c0_44 = arith.constant 0 : index
    %c0_45 = arith.constant 0 : index
    %43 = vector.load %arg12[%c0_44, %c0_45] : memref<32x384xf32, #tpu.memory_space<vmem>>, vector<2x384xf32>
    tpu.vector_store %arg12[%c0_44, %c0_45], %42 {strides = array<i32>} : memref<32x384xf32, #tpu.memory_space<vmem>>, vector<2x384xf32>,
    %cst_46 = arith.constant 0.000000e+00 : f32
    %44 = vector.broadcast %cst_46 : f32 to vector<2x384xf32>
    %c10 = arith.constant 10 : index
    %c0_47 = arith.constant 0 : index
    %45 = vector.load %arg12[%c10, %c0_47] : memref<32x384xf32, #tpu.memory_space<vmem>>, vector<2x384xf32>
    tpu.vector_store %arg12[%c10, %c0_47], %44 {strides = array<i32>} : memref<32x384xf32, #tpu.memory_space<vmem>>, vector<2x384xf32>,
    %c2_48 = arith.constant 2 : index
    %c0_49 = arith.constant 0 : index
    %46 = vector.load %arg12[%c2_48, %c0_49] : memref<32x384xf32, #tpu.memory_space<vmem>>, vector<10x128xf32>
    tpu.vector_store %arg12[%c2_48, %c0_49], %41 {strides = array<i32>} : memref<32x384xf32, #tpu.memory_space<vmem>>, vector<10x128xf32>,
    %c1_50 = arith.constant 1 : index
    %c128_51 = arith.constant 128 : index
    %47 = vector.load %arg12[%c1_50, %c128_51] : memref<32x384xf32, #tpu.memory_space<vmem>>, vector<10x128xf32>
    tpu.vector_store %arg12[%c1_50, %c128_51], %41 {strides = array<i32>} : memref<32x384xf32, #tpu.memory_space<vmem>>, vector<10x128xf32>,
    %c0_52 = arith.constant 0 : index
    %c256 = arith.constant 256 : index
    %48 = vector.load %arg12[%c0_52, %c256] : memref<32x384xf32, #tpu.memory_space<vmem>>, vector<10x128xf32>
    tpu.vector_store %arg12[%c0_52, %c256], %41 {strides = array<i32>} : memref<32x384xf32, #tpu.memory_space<vmem>>, vector<10x128xf32>,
    %c24_53 = arith.constant 24 : index
    %c0_54 = arith.constant 0 : index
    %49 = tpu.strided_load %arg11[%c24_53, %c0_54] {strides = array<i32: 2, 1>} : memref<48x128xf32, #tpu.memory_space<vmem>>, vector<10x128xf32>
    %c25_55 = arith.constant 25 : index
    %c0_56 = arith.constant 0 : index
    %50 = tpu.strided_load %arg11[%c25_55, %c0_56] {strides = array<i32: 2, 1>} : memref<48x128xf32, #tpu.memory_space<vmem>>, vector<10x128xf32>
    %51 = arith.maximumf %49, %50 : vector<10x128xf32>
    %cst_57 = arith.constant 0.000000e+00 : f32
    %52 = vector.broadcast %cst_57 : f32 to vector<2x384xf32>
    %c16_58 = arith.constant 16 : index
    %c0_59 = arith.constant 0 : index
    %53 = vector.load %arg12[%c16_58, %c0_59] : memref<32x384xf32, #tpu.memory_space<vmem>>, vector<2x384xf32>
    tpu.vector_store %arg12[%c16_58, %c0_59], %52 {strides = array<i32>} : memref<32x384xf32, #tpu.memory_space<vmem>>, vector<2x384xf32>,
    %cst_60 = arith.constant 0.000000e+00 : f32
    %54 = vector.broadcast %cst_60 : f32 to vector<2x384xf32>
    %c26_61 = arith.constant 26 : index
    %c0_62 = arith.constant 0 : index
    %55 = vector.load %arg12[%c26_61, %c0_62] : memref<32x384xf32, #tpu.memory_space<vmem>>, vector<2x384xf32>
    tpu.vector_store %arg12[%c26_61, %c0_62], %54 {strides = array<i32>} : memref<32x384xf32, #tpu.memory_space<vmem>>, vector<2x384xf32>,
    %c18 = arith.constant 18 : index
    %c0_63 = arith.constant 0 : index
    %56 = vector.load %arg12[%c18, %c0_63] : memref<32x384xf32, #tpu.memory_space<vmem>>, vector<10x128xf32>
    tpu.vector_store %arg12[%c18, %c0_63], %51 {strides = array<i32>} : memref<32x384xf32, #tpu.memory_space<vmem>>, vector<10x128xf32>,
    %c17 = arith.constant 17 : index
    %c128_64 = arith.constant 128 : index
    %57 = vector.load %arg12[%c17, %c128_64] : memref<32x384xf32, #tpu.memory_space<vmem>>, vector<10x128xf32>
    tpu.vector_store %arg12[%c17, %c128_64], %51 {strides = array<i32>} : memref<32x384xf32, #tpu.memory_space<vmem>>, vector<10x128xf32>,
    %c16_65 = arith.constant 16 : index
    %c256_66 = arith.constant 256 : index
    %58 = vector.load %arg12[%c16_65, %c256_66] : memref<32x384xf32, #tpu.memory_space<vmem>>, vector<10x128xf32>
    tpu.vector_store %arg12[%c16_65, %c256_66], %51 {strides = array<i32>} : memref<32x384xf32, #tpu.memory_space<vmem>>, vector<10x128xf32>,
    %c0_67 = arith.constant 0 : index
    %c0_68 = arith.constant 0 : index
    %59 = vector.load %arg12[%c0_67, %c0_68] : memref<32x384xf32, #tpu.memory_space<vmem>>, vector<32x384xf32>
    %c0_69 = arith.constant 0 : index
    %c0_70 = arith.constant 0 : index
    %60 = vector.load %arg3[%c0_69, %c0_70] : memref<384x256xf32, #tpu.memory_space<vmem>>, vector<384x256xf32>
    %cst_71 = arith.constant dense<0.000000e+00> : vector<32x256xf32>
    %61 = tpu.matmul %59, %60, %cst_71 {dimension_numbers = #tpu.dot_dimension_numbers<[1], [0], [0], [1], [0, 0, 1, 1], [], []>} : vector<32x384xf32>, vector<384x256xf32>, vector<32x256xf32> -> vector<32x256xf32>
    %c0_72 = arith.constant 0 : index
    %c0_73 = arith.constant 0 : index
    %62 = vector.load %arg4[%c0_72, %c0_73] : memref<1x256xf32, #tpu.memory_space<vmem>>, vector<1x256xf32>
    %63 = vector.broadcast %62 : vector<1x256xf32> to vector<32x256xf32>
    %64 = arith.addf %61, %63 : vector<32x256xf32>
    %cst_74 = arith.constant 0.000000e+00 : f32
    %65 = vector.broadcast %cst_74 : f32 to vector<32x256xf32>
    %66 = arith.maximumf %64, %65 : vector<32x256xf32>
    %67 = vector.extract_strided_slice %66 {offsets = [0, 0], sizes = [32, 128], strides = [1, 1]} : vector<32x256xf32> to vector<32x128xf32>
    %68 = vector.extract_strided_slice %66 {offsets = [0, 128], sizes = [32, 128], strides = [1, 1]} : vector<32x256xf32> to vector<32x128xf32>
    %69 = arith.maximumf %67, %68 : vector<32x128xf32>
    %cst_75 = arith.constant 0.000000e+00 : f32
    %70 = vector.broadcast %cst_75 : f32 to vector<1x128xf32>
    %c0_76 = arith.constant 0 : index
    %c0_77 = arith.constant 0 : index
    %71 = vector.load %arg13[%c0_76, %c0_77] : memref<32x128xf32, #tpu.memory_space<vmem>>, vector<1x128xf32>
    tpu.vector_store %arg13[%c0_76, %c0_77], %70 {strides = array<i32>} : memref<32x128xf32, #tpu.memory_space<vmem>>, vector<1x128xf32>,
    %cst_78 = arith.constant 0.000000e+00 : f32
    %72 = vector.broadcast %cst_78 : f32 to vector<1x128xf32>
    %c13 = arith.constant 13 : index
    %c0_79 = arith.constant 0 : index
    %73 = vector.load %arg13[%c13, %c0_79] : memref<32x128xf32, #tpu.memory_space<vmem>>, vector<1x128xf32>
    tpu.vector_store %arg13[%c13, %c0_79], %72 {strides = array<i32>} : memref<32x128xf32, #tpu.memory_space<vmem>>, vector<1x128xf32>,
    %74 = vector.extract_strided_slice %69 {offsets = [0, 0], sizes = [12, 128], strides = [1, 1]} : vector<32x128xf32> to vector<12x128xf32>
    %c1_80 = arith.constant 1 : index
    %c0_81 = arith.constant 0 : index
    %75 = vector.load %arg13[%c1_80, %c0_81] : memref<32x128xf32, #tpu.memory_space<vmem>>, vector<12x128xf32>
    tpu.vector_store %arg13[%c1_80, %c0_81], %74 {strides = array<i32>} : memref<32x128xf32, #tpu.memory_space<vmem>>, vector<12x128xf32>,
    %cst_82 = arith.constant 0.000000e+00 : f32
    %76 = vector.broadcast %cst_82 : f32 to vector<1x128xf32>
    %c16_83 = arith.constant 16 : index
    %c0_84 = arith.constant 0 : index
    %77 = vector.load %arg13[%c16_83, %c0_84] : memref<32x128xf32, #tpu.memory_space<vmem>>, vector<1x128xf32>
    tpu.vector_store %arg13[%c16_83, %c0_84], %76 {strides = array<i32>} : memref<32x128xf32, #tpu.memory_space<vmem>>, vector<1x128xf32>,
    %cst_85 = arith.constant 0.000000e+00 : f32
    %78 = vector.broadcast %cst_85 : f32 to vector<1x128xf32>
    %c29 = arith.constant 29 : index
    %c0_86 = arith.constant 0 : index
    %79 = vector.load %arg13[%c29, %c0_86] : memref<32x128xf32, #tpu.memory_space<vmem>>, vector<1x128xf32>
    tpu.vector_store %arg13[%c29, %c0_86], %78 {strides = array<i32>} : memref<32x128xf32, #tpu.memory_space<vmem>>, vector<1x128xf32>,
    %80 = vector.extract_strided_slice %69 {offsets = [16, 0], sizes = [12, 128], strides = [1, 1]} : vector<32x128xf32> to vector<12x128xf32>
    %c17_87 = arith.constant 17 : index
    %c0_88 = arith.constant 0 : index
    %81 = vector.load %arg13[%c17_87, %c0_88] : memref<32x128xf32, #tpu.memory_space<vmem>>, vector<12x128xf32>
    tpu.vector_store %arg13[%c17_87, %c0_88], %80 {strides = array<i32>} : memref<32x128xf32, #tpu.memory_space<vmem>>, vector<12x128xf32>,
    %c0_89 = arith.constant 0 : index
    %c0_90 = arith.constant 0 : index
    %82 = tpu.strided_load %arg13[%c0_89, %c0_90] {strides = array<i32: 2, 1>} : memref<32x128xf32, #tpu.memory_space<vmem>>, vector<7x128xf32>
    %c1_91 = arith.constant 1 : index
    %c0_92 = arith.constant 0 : index
    %83 = tpu.strided_load %arg13[%c1_91, %c0_92] {strides = array<i32: 2, 1>} : memref<32x128xf32, #tpu.memory_space<vmem>>, vector<7x128xf32>
    %84 = arith.maximumf %82, %83 : vector<7x128xf32>
    %85 = vector.extract_strided_slice %84 {offsets = [0, 0], sizes = [1, 128], strides = [1, 1]} : vector<7x128xf32> to vector<1x128xf32>
    %c0_93 = arith.constant 0 : index
    %c0_94 = arith.constant 0 : index
    %86 = vector.load %arg14[%c0_93, %c0_94] : memref<2x896xf32, #tpu.memory_space<vmem>>, vector<1x128xf32>
    tpu.vector_store %arg14[%c0_93, %c0_94], %85 {strides = array<i32>} : memref<2x896xf32, #tpu.memory_space<vmem>>, vector<1x128xf32>,
    %87 = vector.extract_strided_slice %84 {offsets = [1, 0], sizes = [1, 128], strides = [1, 1]} : vector<7x128xf32> to vector<1x128xf32>
    %c0_95 = arith.constant 0 : index
    %c128_96 = arith.constant 128 : index
    %88 = vector.load %arg14[%c0_95, %c128_96] : memref<2x896xf32, #tpu.memory_space<vmem>>, vector<1x128xf32>
    tpu.vector_store %arg14[%c0_95, %c128_96], %87 {strides = array<i32>} : memref<2x896xf32, #tpu.memory_space<vmem>>, vector<1x128xf32>,
    %89 = vector.extract_strided_slice %84 {offsets = [2, 0], sizes = [1, 128], strides = [1, 1]} : vector<7x128xf32> to vector<1x128xf32>
    %c0_97 = arith.constant 0 : index
    %c256_98 = arith.constant 256 : index
    %90 = vector.load %arg14[%c0_97, %c256_98] : memref<2x896xf32, #tpu.memory_space<vmem>>, vector<1x128xf32>
    tpu.vector_store %arg14[%c0_97, %c256_98], %89 {strides = array<i32>} : memref<2x896xf32, #tpu.memory_space<vmem>>, vector<1x128xf32>,
    %91 = vector.extract_strided_slice %84 {offsets = [3, 0], sizes = [1, 128], strides = [1, 1]} : vector<7x128xf32> to vector<1x128xf32>
    %c0_99 = arith.constant 0 : index
    %c384 = arith.constant 384 : index
    %92 = vector.load %arg14[%c0_99, %c384] : memref<2x896xf32, #tpu.memory_space<vmem>>, vector<1x128xf32>
    tpu.vector_store %arg14[%c0_99, %c384], %91 {strides = array<i32>} : memref<2x896xf32, #tpu.memory_space<vmem>>, vector<1x128xf32>,
    %93 = vector.extract_strided_slice %84 {offsets = [4, 0], sizes = [1, 128], strides = [1, 1]} : vector<7x128xf32> to vector<1x128xf32>
    %c0_100 = arith.constant 0 : index
    %c512 = arith.constant 512 : index
    %94 = vector.load %arg14[%c0_100, %c512] : memref<2x896xf32, #tpu.memory_space<vmem>>, vector<1x128xf32>
    tpu.vector_store %arg14[%c0_100, %c512], %93 {strides = array<i32>} : memref<2x896xf32, #tpu.memory_space<vmem>>, vector<1x128xf32>,
    %95 = vector.extract_strided_slice %84 {offsets = [5, 0], sizes = [1, 128], strides = [1, 1]} : vector<7x128xf32> to vector<1x128xf32>
    %c0_101 = arith.constant 0 : index
    %c640 = arith.constant 640 : index
    %96 = vector.load %arg14[%c0_101, %c640] : memref<2x896xf32, #tpu.memory_space<vmem>>, vector<1x128xf32>
    tpu.vector_store %arg14[%c0_101, %c640], %95 {strides = array<i32>} : memref<2x896xf32, #tpu.memory_space<vmem>>, vector<1x128xf32>,
    %97 = vector.extract_strided_slice %84 {offsets = [6, 0], sizes = [1, 128], strides = [1, 1]} : vector<7x128xf32> to vector<1x128xf32>
    %c0_102 = arith.constant 0 : index
    %c768 = arith.constant 768 : index
    %98 = vector.load %arg14[%c0_102, %c768] : memref<2x896xf32, #tpu.memory_space<vmem>>, vector<1x128xf32>
    tpu.vector_store %arg14[%c0_102, %c768], %97 {strides = array<i32>} : memref<2x896xf32, #tpu.memory_space<vmem>>, vector<1x128xf32>,
    %c16_103 = arith.constant 16 : index
    %c0_104 = arith.constant 0 : index
    %99 = tpu.strided_load %arg13[%c16_103, %c0_104] {strides = array<i32: 2, 1>} : memref<32x128xf32, #tpu.memory_space<vmem>>, vector<7x128xf32>
    %c17_105 = arith.constant 17 : index
    %c0_106 = arith.constant 0 : index
    %100 = tpu.strided_load %arg13[%c17_105, %c0_106] {strides = array<i32: 2, 1>} : memref<32x128xf32, #tpu.memory_space<vmem>>, vector<7x128xf32>
    %101 = arith.maximumf %99, %100 : vector<7x128xf32>
    %102 = vector.extract_strided_slice %101 {offsets = [0, 0], sizes = [1, 128], strides = [1, 1]} : vector<7x128xf32> to vector<1x128xf32>
    %c1_107 = arith.constant 1 : index
    %c0_108 = arith.constant 0 : index
    %103 = vector.load %arg14[%c1_107, %c0_108] : memref<2x896xf32, #tpu.memory_space<vmem>>, vector<1x128xf32>
    tpu.vector_store %arg14[%c1_107, %c0_108], %102 {strides = array<i32>} : memref<2x896xf32, #tpu.memory_space<vmem>>, vector<1x128xf32>,
    %104 = vector.extract_strided_slice %101 {offsets = [1, 0], sizes = [1, 128], strides = [1, 1]} : vector<7x128xf32> to vector<1x128xf32>
    %c1_109 = arith.constant 1 : index
    %c128_110 = arith.constant 128 : index
    %105 = vector.load %arg14[%c1_109, %c128_110] : memref<2x896xf32, #tpu.memory_space<vmem>>, vector<1x128xf32>
    tpu.vector_store %arg14[%c1_109, %c128_110], %104 {strides = array<i32>} : memref<2x896xf32, #tpu.memory_space<vmem>>, vector<1x128xf32>,
    %106 = vector.extract_strided_slice %101 {offsets = [2, 0], sizes = [1, 128], strides = [1, 1]} : vector<7x128xf32> to vector<1x128xf32>
    %c1_111 = arith.constant 1 : index
    %c256_112 = arith.constant 256 : index
    %107 = vector.load %arg14[%c1_111, %c256_112] : memref<2x896xf32, #tpu.memory_space<vmem>>, vector<1x128xf32>
    tpu.vector_store %arg14[%c1_111, %c256_112], %106 {strides = array<i32>} : memref<2x896xf32, #tpu.memory_space<vmem>>, vector<1x128xf32>,
    %108 = vector.extract_strided_slice %101 {offsets = [3, 0], sizes = [1, 128], strides = [1, 1]} : vector<7x128xf32> to vector<1x128xf32>
    %c1_113 = arith.constant 1 : index
    %c384_114 = arith.constant 384 : index
    %109 = vector.load %arg14[%c1_113, %c384_114] : memref<2x896xf32, #tpu.memory_space<vmem>>, vector<1x128xf32>
    tpu.vector_store %arg14[%c1_113, %c384_114], %108 {strides = array<i32>} : memref<2x896xf32, #tpu.memory_space<vmem>>, vector<1x128xf32>,
    %110 = vector.extract_strided_slice %101 {offsets = [4, 0], sizes = [1, 128], strides = [1, 1]} : vector<7x128xf32> to vector<1x128xf32>
    %c1_115 = arith.constant 1 : index
    %c512_116 = arith.constant 512 : index
    %111 = vector.load %arg14[%c1_115, %c512_116] : memref<2x896xf32, #tpu.memory_space<vmem>>, vector<1x128xf32>
    tpu.vector_store %arg14[%c1_115, %c512_116], %110 {strides = array<i32>} : memref<2x896xf32, #tpu.memory_space<vmem>>, vector<1x128xf32>,
    %112 = vector.extract_strided_slice %101 {offsets = [5, 0], sizes = [1, 128], strides = [1, 1]} : vector<7x128xf32> to vector<1x128xf32>
    %c1_117 = arith.constant 1 : index
    %c640_118 = arith.constant 640 : index
    %113 = vector.load %arg14[%c1_117, %c640_118] : memref<2x896xf32, #tpu.memory_space<vmem>>, vector<1x128xf32>
    tpu.vector_store %arg14[%c1_117, %c640_118], %112 {strides = array<i32>} : memref<2x896xf32, #tpu.memory_space<vmem>>, vector<1x128xf32>,
    %114 = vector.extract_strided_slice %101 {offsets = [6, 0], sizes = [1, 128], strides = [1, 1]} : vector<7x128xf32> to vector<1x128xf32>
    %c1_119 = arith.constant 1 : index
    %c768_120 = arith.constant 768 : index
    %115 = vector.load %arg14[%c1_119, %c768_120] : memref<2x896xf32, #tpu.memory_space<vmem>>, vector<1x128xf32>
    tpu.vector_store %arg14[%c1_119, %c768_120], %114 {strides = array<i32>} : memref<2x896xf32, #tpu.memory_space<vmem>>, vector<1x128xf32>,
    %c0_121 = arith.constant 0 : index
    %c0_122 = arith.constant 0 : index
    %116 = vector.load %arg14[%c0_121, %c0_122] : memref<2x896xf32, #tpu.memory_space<vmem>>, vector<2x896xf32>
    %c0_123 = arith.constant 0 : index
    %c0_124 = arith.constant 0 : index
    %117 = vector.load %arg5[%c0_123, %c0_124] : memref<896x50xf32, #tpu.memory_space<vmem>>, vector<896x50xf32>
    %cst_125 = arith.constant dense<0.000000e+00> : vector<2x50xf32>
    %118 = tpu.matmul %116, %117, %cst_125 {dimension_numbers = #tpu.dot_dimension_numbers<[1], [0], [0], [1], [0, 0, 1, 1], [], []>} : vector<2x896xf32>, vector<896x50xf32>, vector<2x50xf32> -> vector<2x50xf32>
    %c0_126 = arith.constant 0 : index
    %c0_127 = arith.constant 0 : index
    %119 = vector.load %arg6[%c0_126, %c0_127] : memref<1x50xf32, #tpu.memory_space<vmem>>, vector<1x50xf32>
    %120 = vector.broadcast %119 : vector<1x50xf32> to vector<2x50xf32>
    %121 = arith.addf %118, %120 : vector<2x50xf32>
    %c0_128 = arith.constant 0 : index
    %c0_129 = arith.constant 0 : index
    %122 = vector.load %arg7[%c0_128, %c0_129] : memref<50x10xf32, #tpu.memory_space<vmem>>, vector<50x10xf32>
    %cst_130 = arith.constant dense<0.000000e+00> : vector<2x10xf32>
    %123 = tpu.matmul %121, %122, %cst_130 {dimension_numbers = #tpu.dot_dimension_numbers<[1], [0], [0], [1], [0, 0, 1, 1], [], []>} : vector<2x50xf32>, vector<50x10xf32>, vector<2x10xf32> -> vector<2x10xf32>
    %c0_131 = arith.constant 0 : index
    %c0_132 = arith.constant 0 : index
    %124 = vector.load %arg8[%c0_131, %c0_132] : memref<1x10xf32, #tpu.memory_space<vmem>>, vector<1x10xf32>
    %125 = vector.broadcast %124 : vector<1x10xf32> to vector<2x10xf32>
    %126 = arith.addf %123, %125 : vector<2x10xf32>
    %cst_133 = arith.constant dense<0xFF800000> : vector<2xf32>
    %127 = vector.multi_reduction <maximumf>, %126, %cst_133 [1] : vector<2x10xf32> to vector<2xf32>
    %128 = vector.shape_cast %127 : vector<2xf32> to vector<2x1xf32>
    %129 = vector.broadcast %128 : vector<2x1xf32> to vector<2x10xf32>
    %130 = arith.subf %126, %129 : vector<2x10xf32>
    %131 = math.exp %130 : vector<2x10xf32>
    %cst_134 = arith.constant dense<0.000000e+00> : vector<2xf32>
    %132 = vector.multi_reduction <add>, %131, %cst_134 [1] : vector<2x10xf32> to vector<2xf32>
    %133 = vector.shape_cast %132 : vector<2xf32> to vector<2x1xf32>
    %134 = math.log %133 : vector<2x1xf32>
    %135 = vector.broadcast %134 : vector<2x1xf32> to vector<2x10xf32>
    %136 = arith.subf %130, %135 : vector<2x10xf32>
    %c0_135 = arith.constant 0 : index
    %c0_136 = arith.constant 0 : index
    %137 = vector.load %arg9[%c0_135, %c0_136] : memref<2x10xf32, #tpu.memory_space<vmem>>, vector<2x10xf32>
    tpu.vector_store %arg9[%c0_135, %c0_136], %136 {strides = array<i32>} : memref<2x10xf32, #tpu.memory_space<vmem>>, vector<2x10xf32>,
    return
  }
}

</mosaic_0001>

<llo_original>
// kernel: forward.1
$region0: #{forward.1}
  #allocation0 [shape = 'u32[]', space=smem, size = 0x4, offset = 0x4, fixed_abs, tag = 'smem constant byte address 0x4 - core index']
  #allocation1 [shape = 'u32[144,128]{1,0:T(1,128)}', space=vmem, size = 0x12000, scoped, tag = 'internal scratch']
  #allocation2 [shape = 'f32[48,192]{1,0:T(8,128)}', space=vmem, size = 0xc000, scoped, tag = 'scratch operand']
  #allocation3 [shape = 'f32[48,128]{1,0:T(8,128)}', space=vmem, size = 0x6000, scoped, tag = 'scratch operand']
  #allocation4 [shape = 'f32[32,384]{1,0:T(8,128)}', space=vmem, size = 0xc000, scoped, tag = 'scratch operand']
  #allocation5 [shape = 'f32[32,128]{1,0:T(8,128)}', space=vmem, size = 0x4000, scoped, tag = 'scratch operand']
  #allocation6 [shape = 'f32[2,896]{1,0:T(2,128)}', space=vmem, size = 0x1c00, scoped, tag = 'scratch operand']
  %s0 = inlined_call_operand.vmem [shape: f32[32,64], index: 0, kind: input, shape index: {}]
  %s1 = inlined_call_operand.vmem [shape: f32[192,256], index: 1, kind: input, shape index: {}]
  %s2 = inlined_call_operand.vmem [shape: f32[1,256], index: 2, kind: input, shape index: {}]
  %s3 = inlined_call_operand.hbm [shape: f32[384,256], index: 3, kind: input, shape index: {}]
  %s4 = inlined_call_operand.vmem [shape: f32[1,256], index: 4, kind: input, shape index: {}]
  %s5 = inlined_call_operand.hbm [shape: f32[896,50], index: 5, kind: input, shape index: {}]
  %s6 = inlined_call_operand.vmem [shape: f32[1,50], index: 6, kind: input, shape index: {}]
  %s7 = inlined_call_operand.vmem [shape: f32[50,10], index: 7, kind: input, shape index: {}]
  %s8 = inlined_call_operand.vmem [shape: f32[1,10], index: 8, kind: input, shape index: {}]
  %s9 = inlined_call_operand.hbm [shape: f32[2,10], index: 9, kind: output, shape index: {}]
  %s10 = sld [smem:[#allocation0]]
  $region54: #{forward.1} parent=0
    _
  %s12 = ssub.s32 1, %s10
  %s13 = scalar_select 0, %s12, %s10
  $region1: #{forward.1} parent=0
    #allocation7 [shape = 'u8[393216]{0}', space=vmem, size = 0x60000, scoped, tag = 'input window, operand 3, single buffered']
    #allocation8 [shape = 's32[1]{0}', space=sflag, size = 0x4, scoped, tag = 'scoped memory for forward.1']
    #allocation9 [shape = 's32[1]{0}', space=sflag, size = 0x4, scoped, tag = 'scoped memory for forward.1']
    #allocation10 [shape = 'u8[458752]{0}', space=vmem, size = 0x70000, scoped, tag = 'input window, operand 5, single buffered']
    #allocation11 [shape = 's32[1]{0}', space=sflag, size = 0x4, scoped, tag = 'scoped memory for forward.1']
    #allocation12 [shape = 'u8[1024]{0}', space=vmem, size = 0x400, scoped, tag = 'output window, operand 0, single buffered']
    %14 = vsyncpa [#allocation8], 0
    %15 = vsyncpa [#allocation11], 0
    %16 = vsyncpa [#allocation9], 0
    // Predicated region
    $region2: #{forward.1} parent=1 // pred_check
      _
    $region3: #{forward.1} parent=1 // pred_check_branch
      %18 = sbr.rel (0) target = $region5
    $region4: #{forward.1} parent=1 // pred_region
      _
    $region5: #{forward.1} parent=1 // pred_fallthru
      _
    // Predicated region
    $region6: #{forward.1} parent=1 // pred_check
      _
    $region7: #{forward.1} parent=1 // pred_check_branch
      %20 = sbr.rel (0) target = $region9
    $region8: #{forward.1} parent=1 // pred_region
      _
    $region9: #{forward.1} parent=1 // pred_fallthru
      _
    // Predicated region
    $region10: #{forward.1} parent=1 // pred_check
      _
    $region11: #{forward.1} parent=1 // pred_check_branch
      %22 = sbr.rel (0) target = $region13
    $region12: #{forward.1} parent=1 // pred_region
      _
    $region13: #{forward.1} parent=1 // pred_fallthru
      _
    // Predicated region
    $region14: #{forward.1} parent=1 // pred_check
      _
    $region15: #{forward.1} parent=1 // pred_check_branch
      %24 = sbr.rel (0) target = $region17
    $region16: #{forward.1} parent=1 // pred_region
      %s26 = ssub.s32 12288, 12288
      %27 = vsyncadd [#allocation8], %s26
      %s28 = sshll.u32 [#allocation7], 4
      %s29 = int_to_ptr.vmem [resolvable:$true] %s28
      %34 = dma.hbm_to_vmem [thread:$0]  %s3, 12288, %s29, [#allocation8], 256, 256, 16
    $region17: #{forward.1} parent=1 // pred_fallthru
      _
    // Predicated region
    $region18: #{forward.1} parent=1 // pred_check
      _
    $region19: #{forward.1} parent=1 // pred_check_branch
      %36 = sbr.rel (0) target = $region21
    $region20: #{forward.1} parent=1 // pred_region
      _
    $region21: #{forward.1} parent=1 // pred_fallthru
      _
    // Predicated region
    $region22: #{forward.1} parent=1 // pred_check
      _
    $region23: #{forward.1} parent=1 // pred_check_branch
      %38 = sbr.rel (0) target = $region25
    $region24: #{forward.1} parent=1 // pred_region
      %s40 = ssub.s32 14336, 14336
      %41 = vsyncadd [#allocation11], %s40
      %s42 = sshll.u32 [#allocation10], 4
      %s43 = int_to_ptr.vmem [resolvable:$true] %s42
      %48 = dma.hbm_to_vmem [thread:$0]  %s5, 14336, %s43, [#allocation11], 128, 128, 8
    $region25: #{forward.1} parent=1 // pred_fallthru
      _
    // Predicated region
    $region26: #{forward.1} parent=1 // pred_check
      _
    $region27: #{forward.1} parent=1 // pred_check_branch
      %50 = sbr.rel (0) target = $region29
    $region28: #{forward.1} parent=1 // pred_region
      _
    $region29: #{forward.1} parent=1 // pred_fallthru
      _
    // Predicated region
    $region30: #{forward.1} parent=1 // pred_check
      _
    $region31: #{forward.1} parent=1 // pred_check_branch
      %52 = sbr.rel (0) target = $region33
    $region32: #{forward.1} parent=1 // pred_region
      _
    $region33: #{forward.1} parent=1 // pred_fallthru
      _
    // Predicated region
    $region34: #{forward.1} parent=1 // pred_check
      _
    $region35: #{forward.1} parent=1 // pred_check_branch
      %54 = sbr.rel (0) target = $region37
    $region36: #{forward.1} parent=1 // pred_region
      _
    $region37: #{forward.1} parent=1 // pred_fallthru
      _
    // Predicated region
    $region38: #{forward.1} parent=1 // pred_check
      _
    $region39: #{forward.1} parent=1 // pred_check_branch
      %56 = sbr.rel (0) target = $region41
    $region40: #{forward.1} parent=1 // pred_region
      %57 = dma.done [#allocation8], 12288
    $region41: #{forward.1} parent=1 // pred_fallthru
      _
    // Predicated region
    $region42: #{forward.1} parent=1 // pred_check
      _
    $region43: #{forward.1} parent=1 // pred_check_branch
      %59 = sbr.rel (0) target = $region45
    $region44: #{forward.1} parent=1 // pred_region
      %60 = dma.done [#allocation11], 14336
    $region45: #{forward.1} parent=1 // pred_fallthru
      _
    %61 = vst [vmem:[#allocation2] sm:$0x3] 0.0
    %vm62 = vcmask 517120
    %63 = vst.msk [vmem:[#allocation2 + $0x8] sm:$0x3] %vm62, 0.0
    %64 = vst [vmem:[#allocation2 + $0x20] sm:$0x3] 0.0
    %65 = vst.msk [vmem:[#allocation2 + $0x28] sm:$0x3] %vm62, 0.0
    %v66 = vld [vmem:[%s0] sm:$0xff]
    %v67 = vld [vmem:[%s0 + $0x8] sm:$0xff]
    %vm70 = vcmask 1041408
    %v71 = vrot.slane %v66, 6
    %v72 = vrot.slane %v67, 6
    %v73 = vsel %vm70, %v71, %v72
    %vm77 = vcmask 523266
    %78 = vst.msk [vmem:[#allocation2] sm:$0xfc] %vm77, %v71
    %vm79 = vcmask 523264
    %80 = vst.msk [vmem:[#allocation2 + $0x10] sm:$0xff] %vm79, %v73
    %81 = vst.msk [vmem:[#allocation2 + $0x20] sm:$0x3] %vm62, %v72
    %vm82 = vcmask 1040384
    %v83 = vrot.slane %v66, 7
    %v84 = vrot.slane %v67, 7
    %v85 = vsel %vm82, %v83, %v84
    %86 = vrot.lane.b32.xlu0 %v83, 64
    %v87 = vpop.permute.xlu0 %86
    %88 = vrot.lane.b32.xlu0 %v85, 64
    %v89 = vpop.permute.xlu0 %88
    %90 = vrot.lane.b32.xlu0 %v84, 64
    %v91 = vpop.permute.xlu0 %90
    %vm95 = vcmask 1048065
    %96 = vst.msk [vmem:[#allocation2] sm:$0xfe] %vm95, %v87
    %vm97 = vcmask 1048064
    %98 = vst.msk [vmem:[#allocation2 + $0x10] sm:$0xff] %vm97, %v89
    %vm99 = vcmask 1040896
    %100 = vst.msk [vmem:[#allocation2 + $0x20] sm:$0x1] %vm99, %v91
    %101 = vst.msk [vmem:[#allocation2 + $0x8] sm:$0xff] %vm79, %v66
    %102 = vst.msk [vmem:[#allocation2 + $0x18] sm:$0xff] %vm79, %v67
    %103 = vst [vmem:[#allocation2 + $0x30] sm:$0x3] 0.0
    %104 = vst.msk [vmem:[#allocation2 + $0x38] sm:$0x3] %vm62, 0.0
    %105 = vst [vmem:[#allocation2 + $0x50] sm:$0x3] 0.0
    %106 = vst.msk [vmem:[#allocation2 + $0x58] sm:$0x3] %vm62, 0.0
    %v107 = vld [vmem:[%s0 + $0x10] sm:$0xff]
    %v108 = vld [vmem:[%s0 + $0x18] sm:$0xff]
    %v111 = vrot.slane %v107, 6
    %v112 = vrot.slane %v108, 6
    %v113 = vsel %vm70, %v111, %v112
    %117 = vst.msk [vmem:[#allocation2 + $0x30] sm:$0xfc] %vm77, %v111
    %118 = vst.msk [vmem:[#allocation2 + $0x40] sm:$0xff] %vm79, %v113
    %119 = vst.msk [vmem:[#allocation2 + $0x50] sm:$0x3] %vm62, %v112
    %v120 = vrot.slane %v107, 7
    %v121 = vrot.slane %v108, 7
    %v122 = vsel %vm82, %v120, %v121
    %123 = vrot.lane.b32.xlu0 %v120, 64
    %v124 = vpop.permute.xlu0 %123
    %125 = vrot.lane.b32.xlu0 %v122, 64
    %v126 = vpop.permute.xlu0 %125
    %127 = vrot.lane.b32.xlu0 %v121, 64
    %v128 = vpop.permute.xlu0 %127
    %132 = vst.msk [vmem:[#allocation2 + $0x30] sm:$0xfe] %vm95, %v124
    %133 = vst.msk [vmem:[#allocation2 + $0x40] sm:$0xff] %vm97, %v126
    %134 = vst.msk [vmem:[#allocation2 + $0x50] sm:$0x1] %vm99, %v128
    %135 = vst.msk [vmem:[#allocation2 + $0x38] sm:$0xff] %vm79, %v107
    %136 = vst.msk [vmem:[#allocation2 + $0x48] sm:$0xff] %vm79, %v108
    %v137 = vld [vmem:[#allocation2] sm:$0xff]
    %v138 = vld [vmem:[#allocation2 + $0x8] sm:$0xff]
    %v139 = vld [vmem:[#allocation2 + $0x10] sm:$0xff]
    %v140 = vld [vmem:[#allocation2 + $0x18] sm:$0xff]
    %v141 = vld [vmem:[#allocation2 + $0x20] sm:$0xff]
    %v142 = vld [vmem:[#allocation2 + $0x28] sm:$0xff]
    %v143 = vld [vmem:[#allocation2 + $0x30] sm:$0xff]
    %v144 = vld [vmem:[#allocation2 + $0x38] sm:$0xff]
    %v145 = vld [vmem:[#allocation2 + $0x40] sm:$0xff]
    %v146 = vld [vmem:[#allocation2 + $0x48] sm:$0xff]
    %v147 = vld [vmem:[#allocation2 + $0x50] sm:$0xff]
    %v148 = vld [vmem:[#allocation2 + $0x58] sm:$0xff]
    %v149 = vld [vmem:[%s1] sm:$0xff]
    %v150 = vld [vmem:[%s1 + $0x8] sm:$0xff]
    %v151 = vld [vmem:[%s1 + $0x10] sm:$0xff]
    %v152 = vld [vmem:[%s1 + $0x18] sm:$0xff]
    %v153 = vld [vmem:[%s1 + $0x20] sm:$0xff]
    %v154 = vld [vmem:[%s1 + $0x28] sm:$0xff]
    %v155 = vld [vmem:[%s1 + $0x30] sm:$0xff]
    %v156 = vld [vmem:[%s1 + $0x38] sm:$0xff]
    %v157 = vld [vmem:[%s1 + $0x40] sm:$0xff]
    %v158 = vld [vmem:[%s1 + $0x48] sm:$0xff]
    %v159 = vld [vmem:[%s1 + $0x50] sm:$0xff]
    %v160 = vld [vmem:[%s1 + $0x58] sm:$0xff]
    %v161 = vld [vmem:[%s1 + $0x60] sm:$0xff]
    %v162 = vld [vmem:[%s1 + $0x68] sm:$0xff]
    %v163 = vld [vmem:[%s1 + $0x70] sm:$0xff]
    %v164 = vld [vmem:[%s1 + $0x78] sm:$0xff]
    %v165 = vld [vmem:[%s1 + $0x80] sm:$0xff]
    %v166 = vld [vmem:[%s1 + $0x88] sm:$0xff]
    %v167 = vld [vmem:[%s1 + $0x90] sm:$0xff]
    %v168 = vld [vmem:[%s1 + $0x98] sm:$0xff]
    %v169 = vld [vmem:[%s1 + $0xa0] sm:$0xff]
    %v170 = vld [vmem:[%s1 + $0xa8] sm:$0xff]
    %v171 = vld [vmem:[%s1 + $0xb0] sm:$0xff]
    %v172 = vld [vmem:[%s1 + $0xb8] sm:$0xff]
    %v173 = vld [vmem:[%s1 + $0xc0] sm:$0xff]
    %v174 = vld [vmem:[%s1 + $0xc8] sm:$0xff]
    %v175 = vld [vmem:[%s1 + $0xd0] sm:$0xff]
    %v176 = vld [vmem:[%s1 + $0xd8] sm:$0xff]
    %v177 = vld [vmem:[%s1 + $0xe0] sm:$0xff]
    %v178 = vld [vmem:[%s1 + $0xe8] sm:$0xff]
    %v179 = vld [vmem:[%s1 + $0xf0] sm:$0xff]
    %v180 = vld [vmem:[%s1 + $0xf8] sm:$0xff]
    %v181 = vld [vmem:[%s1 + $0x100] sm:$0xff]
    %v182 = vld [vmem:[%s1 + $0x108] sm:$0xff]
    %v183 = vld [vmem:[%s1 + $0x110] sm:$0xff]
    %v184 = vld [vmem:[%s1 + $0x118] sm:$0xff]
    %v185 = vld [vmem:[%s1 + $0x120] sm:$0xff]
    %v186 = vld [vmem:[%s1 + $0x128] sm:$0xff]
    %v187 = vld [vmem:[%s1 + $0x130] sm:$0xff]
    %v188 = vld [vmem:[%s1 + $0x138] sm:$0xff]
    %v189 = vld [vmem:[%s1 + $0x140] sm:$0xff]
    %v190 = vld [vmem:[%s1 + $0x148] sm:$0xff]
    %v191 = vld [vmem:[%s1 + $0x150] sm:$0xff]
    %v192 = vld [vmem:[%s1 + $0x158] sm:$0xff]
    %v193 = vld [vmem:[%s1 + $0x160] sm:$0xff]
    %v194 = vld [vmem:[%s1 + $0x168] sm:$0xff]
    %v195 = vld [vmem:[%s1 + $0x170] sm:$0xff]
    %v196 = vld [vmem:[%s1 + $0x178] sm:$0xff]
    %v197 = vld [vmem:[%s2] sm:$0x3]
    %v199 = vlaneseq
    %v200 = vshrl.u32 %v199, 7
    %v201 = vsub.s32 0, %v200
    %v202 = vrot.slane %v197, %v201
    %v203 = vlaneseq
    %v204 = vshrl.u32 %v203, 7
    %v205 = vsub.s32 1, %v204
    %v206 = vrot.slane %v197, %v205
    %v210 = vsel %vm79, %v138, 0
    %v213 = vsel %vm79, %v140, 0
    %v216 = vsel %vm79, %v142, 0
    %v219 = vsel %vm79, %v144, 0
    %v222 = vsel %vm79, %v146, 0
    %v225 = vsel %vm79, %v148, 0
    %227 = vmatprep.subr.mxu0 %v180
    %228 = vmatpush1.msra.mxu0 %v179
    %229 = vmatprep.subr.mxu0 %v178
    %230 = vmatpush1.msra.mxu0 %v177
    %231 = vmatprep.subr.mxu0 %v176
    %232 = vmatpush1.msra.mxu0 %v175
    %233 = vmatprep.subr.mxu0 %v174
    %234 = vmatpush1.msra.mxu0 %v173
    %235 = vmatprep.subr.mxu0 %v172
    %236 = vmatpush1.msra.mxu0 %v171
    %237 = vmatprep.subr.mxu0 %v170
    %238 = vmatpush1.msra.mxu0 %v169
    %239 = vmatprep.subr.mxu0 %v168
    %240 = vmatpush1.msra.mxu0 %v167
    %241 = vmatprep.subr.mxu0 %v166
    %242 = vmatpush1.msra.mxu0 %v165
    %243 = vmatprep.subr.mxu0 %v164
    %244 = vmatpush1.msra.mxu0 %v163
    %245 = vmatprep.subr.mxu0 %v162
    %246 = vmatpush1.msra.mxu0 %v161
    %247 = vmatprep.subr.mxu0 %v160
    %248 = vmatpush1.msra.mxu0 %v159
    %249 = vmatprep.subr.mxu0 %v158
    %250 = vmatpush1.msra.mxu0 %v157
    %251 = vmatprep.subr.mxu0 %v156
    %252 = vmatpush1.msra.mxu0 %v155
    %253 = vmatprep.subr.mxu0 %v154
    %254 = vmatpush1.msra.mxu0 %v153
    %255 = vmatprep.subr.mxu0 %v152
    %256 = vmatpush1.msra.mxu0 %v151
    %257 = vmatprep.subr.mxu0 %v150
    %258 = vmatpush1.msra.mxu0 %v149
    %259 = vmatprep.subr.mxu0 0.0
    %260 = vmatpush2.msra.mxu0 0.0
    %261 = vmatprep.subr.mxu0 0.0
    %262 = vmatpush2.msra.mxu0 0.0
    %263 = vmatprep.subr.mxu0 0.0
    %264 = vmatpush2.msra.mxu0 0.0
    %265 = vmatprep.subr.mxu0 0.0
    %266 = vmatpush2.msra.mxu0 0.0
    %267 = vmatprep.subr.mxu0 0.0
    %268 = vmatpush2.msra.mxu0 0.0
    %269 = vmatprep.subr.mxu0 0.0
    %270 = vmatpush2.msra.mxu0 0.0
    %271 = vmatprep.subr.mxu0 0.0
    %272 = vmatpush2.msra.mxu0 0.0
    %273 = vmatprep.subr.mxu0 0.0
    %274 = vmatpush2.msra.mxu0 0.0
    %275 = vmatprep.subr.mxu0 %v196
    %276 = vmatpush2.msra.mxu0 %v195
    %277 = vmatprep.subr.mxu0 %v194
    %278 = vmatpush2.msra.mxu0 %v193
    %279 = vmatprep.subr.mxu0 %v192
    %280 = vmatpush2.msra.mxu0 %v191
    %281 = vmatprep.subr.mxu0 %v190
    %282 = vmatpush2.msra.mxu0 %v189
    %283 = vmatprep.subr.mxu0 %v188
    %284 = vmatpush2.msra.mxu0 %v187
    %285 = vmatprep.subr.mxu0 %v186
    %286 = vmatpush2.msra.mxu0 %v185
    %287 = vmatprep.subr.mxu0 %v184
    %288 = vmatpush2.msra.mxu0 %v183
    %289 = vmatprep.subr.mxu0 %v182
    %290 = vmatpush2.msra.mxu0 %v181
    %291 = vmatprep.mubr.f32.mxu0 %v210
    %292 = vmatmul.mubr.f32.gmra.mxu0 %v137
    %v293 = vpop.f32.mrf.mxu0
    %v294 = vadd.f32 %v202, %v293
    %v295 = vpop.f32.mrf.mxu0
    %v296 = vadd.f32 %v206, %v295
    %297 = vmatprep.mubr.f32.mxu0 %v213
    %298 = vmatmul.mubr.f32.gmra.mxu0 %v139
    %v299 = vpop.f32.mrf.mxu0
    %v300 = vadd.f32 %v202, %v299
    %v301 = vpop.f32.mrf.mxu0
    %v302 = vadd.f32 %v206, %v301
    %303 = vmatprep.mubr.f32.mxu0 %v216
    %304 = vmatmul.mubr.f32.gmra.mxu0 %v141
    %v305 = vpop.f32.mrf.mxu0
    %v306 = vadd.f32 %v202, %v305
    %v307 = vpop.f32.mrf.mxu0
    %v308 = vadd.f32 %v206, %v307
    %309 = vmatprep.mubr.f32.mxu0 %v219
    %310 = vmatmul.mubr.f32.gmra.mxu0 %v143
    %v311 = vpop.f32.mrf.mxu0
    %v312 = vadd.f32 %v202, %v311
    %v313 = vpop.f32.mrf.mxu0
    %v314 = vadd.f32 %v206, %v313
    %315 = vmatprep.mubr.f32.mxu0 %v222
    %316 = vmatmul.mubr.f32.gmra.mxu0 %v145
    %v317 = vpop.f32.mrf.mxu0
    %v318 = vadd.f32 %v202, %v317
    %v319 = vpop.f32.mrf.mxu0
    %v320 = vadd.f32 %v206, %v319
    %321 = vmatprep.mubr.f32.mxu0 %v225
    %322 = vmatmul.mubr.f32.gmra.mxu0 %v147
    %v323 = vpop.f32.mrf.mxu0
    %v324 = vadd.f32 %v202, %v323
    %v325 = vpop.f32.mrf.mxu0
    %v326 = vadd.f32 %v206, %v325
    %327 = vdwg.mxu0
    %v328 = vmax.f32 %v294, 0.0
    %v329 = vmax.f32 %v296, 0.0
    %v330 = vmax.f32 %v300, 0.0
    %v331 = vmax.f32 %v302, 0.0
    %v332 = vmax.f32 %v306, 0.0
    %v333 = vmax.f32 %v308, 0.0
    %v334 = vmax.f32 %v312, 0.0
    %v335 = vmax.f32 %v314, 0.0
    %v336 = vmax.f32 %v318, 0.0
    %v337 = vmax.f32 %v320, 0.0
    %v338 = vmax.f32 %v324, 0.0
    %v339 = vmax.f32 %v326, 0.0
    %v340 = vmax.f32 %v328, %v329
    %v341 = vmax.f32 %v330, %v331
    %v342 = vmax.f32 %v332, %v333
    %v343 = vmax.f32 %v334, %v335
    %v344 = vmax.f32 %v336, %v337
    %v345 = vmax.f32 %v338, %v339
    %346 = vst [vmem:[#allocation3] sm:$0x1] 0.0
    %347 = vst [vmem:[#allocation3 + $0x13] sm:$0x1] 0.0
    %348 = vst [vmem:[#allocation3 + $0x1] sm:$0xff] %v340
    %349 = vst [vmem:[#allocation3 + $0x9] sm:$0xff] %v341
    %350 = vst [vmem:[#allocation3 + $0x11] sm:$0x3] %v342
    %351 = vst [vmem:[#allocation3 + $0x18] sm:$0x1] 0.0
    %352 = vst [vmem:[#allocation3 + $0x2b] sm:$0x1] 0.0
    %353 = vst [vmem:[#allocation3 + $0x19] sm:$0xff] %v343
    %354 = vst [vmem:[#allocation3 + $0x21] sm:$0xff] %v344
    %355 = vst [vmem:[#allocation3 + $0x29] sm:$0x3] %v345
    %v356 = vld [vmem:[#allocation3] ss:$2 sm:$0xff]
    %s357 = scalar_lea.vmem [#allocation3], 16
    %v358 = vld [vmem:[%s357] ss:$2 sm:$0x3]
    %s359 = scalar_lea.vmem [#allocation3], 1
    %v360 = vld [vmem:[%s359] ss:$2 sm:$0xff]
    %s361 = scalar_lea.vmem [#allocation3], 17
    %v362 = vld [vmem:[%s361] ss:$2 sm:$0x3]
    %v363 = vmax.f32 %v356, %v360
    %v364 = vmax.f32 %v358, %v362
    %365 = vst [vmem:[#allocation4] sm:$0x3] 0.0
    %366 = vst [vmem:[#allocation4 + $0x8] sm:$0x3] 0.0
    %367 = vst [vmem:[#allocation4 + $0x10] sm:$0x3] 0.0
    %368 = vst [vmem:[#allocation4 + $0x18] sm:$0xc] 0.0
    %369 = vst [vmem:[#allocation4 + $0x20] sm:$0xc] 0.0
    %370 = vst [vmem:[#allocation4 + $0x28] sm:$0xc] 0.0
    %v373 = vrot.slane %v363, 6
    %v374 = vrot.slane %v364, 6
    %v375 = vsel %vm70, %v373, %v374
    %378 = vst [vmem:[#allocation4] sm:$0xfc] %v373
    %379 = vst [vmem:[#allocation4 + $0x18] sm:$0xf] %v375
    %v380 = vrot.slane %v363, 7
    %v381 = vrot.slane %v364, 7
    %v382 = vsel %vm82, %v380, %v381
    %385 = vst [vmem:[#allocation4 + $0x8] sm:$0xfe] %v380
    %386 = vst [vmem:[#allocation4 + $0x20] sm:$0x7] %v382
    %387 = vst [vmem:[#allocation4 + $0x10] sm:$0xff] %v363
    %388 = vst [vmem:[#allocation4 + $0x28] sm:$0x3] %v364
    %s389 = scalar_lea.vmem [#allocation3], 24
    %v390 = vld [vmem:[%s389] ss:$2 sm:$0xff]
    %s391 = scalar_lea.vmem [#allocation3], 40
    %v392 = vld [vmem:[%s391] ss:$2 sm:$0x3]
    %s393 = scalar_lea.vmem [#allocation3], 25
    %v394 = vld [vmem:[%s393] ss:$2 sm:$0xff]
    %s395 = scalar_lea.vmem [#allocation3], 41
    %v396 = vld [vmem:[%s395] ss:$2 sm:$0x3]
    %v397 = vmax.f32 %v390, %v394
    %v398 = vmax.f32 %v392, %v396
    %399 = vst [vmem:[#allocation4 + $0x30] sm:$0x3] 0.0
    %400 = vst [vmem:[#allocation4 + $0x38] sm:$0x3] 0.0
    %401 = vst [vmem:[#allocation4 + $0x40] sm:$0x3] 0.0
    %402 = vst [vmem:[#allocation4 + $0x48] sm:$0xc] 0.0
    %403 = vst [vmem:[#allocation4 + $0x50] sm:$0xc] 0.0
    %404 = vst [vmem:[#allocation4 + $0x58] sm:$0xc] 0.0
    %v407 = vrot.slane %v397, 6
    %v408 = vrot.slane %v398, 6
    %v409 = vsel %vm70, %v407, %v408
    %412 = vst [vmem:[#allocation4 + $0x30] sm:$0xfc] %v407
    %413 = vst [vmem:[#allocation4 + $0x48] sm:$0xf] %v409
    %v414 = vrot.slane %v397, 7
    %v415 = vrot.slane %v398, 7
    %v416 = vsel %vm82, %v414, %v415
    %419 = vst [vmem:[#allocation4 + $0x38] sm:$0xfe] %v414
    %420 = vst [vmem:[#allocation4 + $0x50] sm:$0x7] %v416
    %421 = vst [vmem:[#allocation4 + $0x40] sm:$0xff] %v397
    %422 = vst [vmem:[#allocation4 + $0x58] sm:$0x3] %v398
    %v423 = vld [vmem:[#allocation4] sm:$0xff]
    %v424 = vld [vmem:[#allocation4 + $0x8] sm:$0xff]
    %v425 = vld [vmem:[#allocation4 + $0x10] sm:$0xff]
    %v426 = vld [vmem:[#allocation4 + $0x18] sm:$0xff]
    %v427 = vld [vmem:[#allocation4 + $0x20] sm:$0xff]
    %v428 = vld [vmem:[#allocation4 + $0x28] sm:$0xff]
    %v429 = vld [vmem:[#allocation4 + $0x30] sm:$0xff]
    %v430 = vld [vmem:[#allocation4 + $0x38] sm:$0xff]
    %v431 = vld [vmem:[#allocation4 + $0x40] sm:$0xff]
    %v432 = vld [vmem:[#allocation4 + $0x48] sm:$0xff]
    %v433 = vld [vmem:[#allocation4 + $0x50] sm:$0xff]
    %v434 = vld [vmem:[#allocation4 + $0x58] sm:$0xff]
    %v435 = vld [vmem:[#allocation7] sm:$0xff]
    %v436 = vld [vmem:[#allocation7 + $0x8] sm:$0xff]
    %v437 = vld [vmem:[#allocation7 + $0x10] sm:$0xff]
    %v438 = vld [vmem:[#allocation7 + $0x18] sm:$0xff]
    %v439 = vld [vmem:[#allocation7 + $0x20] sm:$0xff]
    %v440 = vld [vmem:[#allocation7 + $0x28] sm:$0xff]
    %v441 = vld [vmem:[#allocation7 + $0x30] sm:$0xff]
    %v442 = vld [vmem:[#allocation7 + $0x38] sm:$0xff]
    %v443 = vld [vmem:[#allocation7 + $0x40] sm:$0xff]
    %v444 = vld [vmem:[#allocation7 + $0x48] sm:$0xff]
    %v445 = vld [vmem:[#allocation7 + $0x50] sm:$0xff]
    %v446 = vld [vmem:[#allocation7 + $0x58] sm:$0xff]
    %v447 = vld [vmem:[#allocation7 + $0x60] sm:$0xff]
    %v448 = vld [vmem:[#allocation7 + $0x68] sm:$0xff]
    %v449 = vld [vmem:[#allocation7 + $0x70] sm:$0xff]
    %v450 = vld [vmem:[#allocation7 + $0x78] sm:$0xff]
    %v451 = vld [vmem:[#allocation7 + $0x80] sm:$0xff]
    %v452 = vld [vmem:[#allocation7 + $0x88] sm:$0xff]
    %v453 = vld [vmem:[#allocation7 + $0x90] sm:$0xff]
    %v454 = vld [vmem:[#allocation7 + $0x98] sm:$0xff]
    %v455 = vld [vmem:[#allocation7 + $0xa0] sm:$0xff]
    %v456 = vld [vmem:[#allocation7 + $0xa8] sm:$0xff]
    %v457 = vld [vmem:[#allocation7 + $0xb0] sm:$0xff]
    %v458 = vld [vmem:[#allocation7 + $0xb8] sm:$0xff]
    %v459 = vld [vmem:[#allocation7 + $0xc0] sm:$0xff]
    %v460 = vld [vmem:[#allocation7 + $0xc8] sm:$0xff]
    %v461 = vld [vmem:[#allocation7 + $0xd0] sm:$0xff]
    %v462 = vld [vmem:[#allocation7 + $0xd8] sm:$0xff]
    %v463 = vld [vmem:[#allocation7 + $0xe0] sm:$0xff]
    %v464 = vld [vmem:[#allocation7 + $0xe8] sm:$0xff]
    %v465 = vld [vmem:[#allocation7 + $0xf0] sm:$0xff]
    %v466 = vld [vmem:[#allocation7 + $0xf8] sm:$0xff]
    %v467 = vld [vmem:[#allocation7 + $0x100] sm:$0xff]
    %v468 = vld [vmem:[#allocation7 + $0x108] sm:$0xff]
    %v469 = vld [vmem:[#allocation7 + $0x110] sm:$0xff]
    %v470 = vld [vmem:[#allocation7 + $0x118] sm:$0xff]
    %v471 = vld [vmem:[#allocation7 + $0x120] sm:$0xff]
    %v472 = vld [vmem:[#allocation7 + $0x128] sm:$0xff]
    %v473 = vld [vmem:[#allocation7 + $0x130] sm:$0xff]
    %v474 = vld [vmem:[#allocation7 + $0x138] sm:$0xff]
    %v475 = vld [vmem:[#allocation7 + $0x140] sm:$0xff]
    %v476 = vld [vmem:[#allocation7 + $0x148] sm:$0xff]
    %v477 = vld [vmem:[#allocation7 + $0x150] sm:$0xff]
    %v478 = vld [vmem:[#allocation7 + $0x158] sm:$0xff]
    %v479 = vld [vmem:[#allocation7 + $0x160] sm:$0xff]
    %v480 = vld [vmem:[#allocation7 + $0x168] sm:$0xff]
    %v481 = vld [vmem:[#allocation7 + $0x170] sm:$0xff]
    %v482 = vld [vmem:[#allocation7 + $0x178] sm:$0xff]
    %v483 = vld [vmem:[#allocation7 + $0x180] sm:$0xff]
    %v484 = vld [vmem:[#allocation7 + $0x188] sm:$0xff]
    %v485 = vld [vmem:[#allocation7 + $0x190] sm:$0xff]
    %v486 = vld [vmem:[#allocation7 + $0x198] sm:$0xff]
    %v487 = vld [vmem:[#allocation7 + $0x1a0] sm:$0xff]
    %v488 = vld [vmem:[#allocation7 + $0x1a8] sm:$0xff]
    %v489 = vld [vmem:[#allocation7 + $0x1b0] sm:$0xff]
    %v490 = vld [vmem:[#allocation7 + $0x1b8] sm:$0xff]
    %v491 = vld [vmem:[#allocation7 + $0x1c0] sm:$0xff]
    %v492 = vld [vmem:[#allocation7 + $0x1c8] sm:$0xff]
    %v493 = vld [vmem:[#allocation7 + $0x1d0] sm:$0xff]
    %v494 = vld [vmem:[#allocation7 + $0x1d8] sm:$0xff]
    %v495 = vld [vmem:[#allocation7 + $0x1e0] sm:$0xff]
    %v496 = vld [vmem:[#allocation7 + $0x1e8] sm:$0xff]
    %v497 = vld [vmem:[#allocation7 + $0x1f0] sm:$0xff]
    %v498 = vld [vmem:[#allocation7 + $0x1f8] sm:$0xff]
    %v499 = vld [vmem:[#allocation7 + $0x200] sm:$0xff]
    %v500 = vld [vmem:[#allocation7 + $0x208] sm:$0xff]
    %v501 = vld [vmem:[#allocation7 + $0x210] sm:$0xff]
    %v502 = vld [vmem:[#allocation7 + $0x218] sm:$0xff]
    %v503 = vld [vmem:[#allocation7 + $0x220] sm:$0xff]
    %v504 = vld [vmem:[#allocation7 + $0x228] sm:$0xff]
    %v505 = vld [vmem:[#allocation7 + $0x230] sm:$0xff]
    %v506 = vld [vmem:[#allocation7 + $0x238] sm:$0xff]
    %v507 = vld [vmem:[#allocation7 + $0x240] sm:$0xff]
    %v508 = vld [vmem:[#allocation7 + $0x248] sm:$0xff]
    %v509 = vld [vmem:[#allocation7 + $0x250] sm:$0xff]
    %v510 = vld [vmem:[#allocation7 + $0x258] sm:$0xff]
    %v511 = vld [vmem:[#allocation7 + $0x260] sm:$0xff]
    %v512 = vld [vmem:[#allocation7 + $0x268] sm:$0xff]
    %v513 = vld [vmem:[#allocation7 + $0x270] sm:$0xff]
    %v514 = vld [vmem:[#allocation7 + $0x278] sm:$0xff]
    %v515 = vld [vmem:[#allocation7 + $0x280] sm:$0xff]
    %v516 = vld [vmem:[#allocation7 + $0x288] sm:$0xff]
    %v517 = vld [vmem:[#allocation7 + $0x290] sm:$0xff]
    %v518 = vld [vmem:[#allocation7 + $0x298] sm:$0xff]
    %v519 = vld [vmem:[#allocation7 + $0x2a0] sm:$0xff]
    %v520 = vld [vmem:[#allocation7 + $0x2a8] sm:$0xff]
    %v521 = vld [vmem:[#allocation7 + $0x2b0] sm:$0xff]
    %v522 = vld [vmem:[#allocation7 + $0x2b8] sm:$0xff]
    %v523 = vld [vmem:[#allocation7 + $0x2c0] sm:$0xff]
    %v524 = vld [vmem:[#allocation7 + $0x2c8] sm:$0xff]
    %v525 = vld [vmem:[#allocation7 + $0x2d0] sm:$0xff]
    %v526 = vld [vmem:[#allocation7 + $0x2d8] sm:$0xff]
    %v527 = vld [vmem:[#allocation7 + $0x2e0] sm:$0xff]
    %v528 = vld [vmem:[#allocation7 + $0x2e8] sm:$0xff]
    %v529 = vld [vmem:[#allocation7 + $0x2f0] sm:$0xff]
    %v530 = vld [vmem:[#allocation7 + $0x2f8] sm:$0xff]
    %v531 = vld [vmem:[%s4] sm:$0x3]
    %v533 = vlaneseq
    %v534 = vshrl.u32 %v533, 7
    %v535 = vsub.s32 0, %v534
    %v536 = vrot.slane %v531, %v535
    %v537 = vlaneseq
    %v538 = vshrl.u32 %v537, 7
    %v539 = vsub.s32 1, %v538
    %v540 = vrot.slane %v531, %v539
    %543 = vmatprep.subr.mxu0 %v466
    %544 = vmatpush1.msra.mxu0 %v465
    %545 = vmatprep.subr.mxu0 %v464
    %546 = vmatpush1.msra.mxu0 %v463
    %547 = vmatprep.subr.mxu0 %v462
    %548 = vmatpush1.msra.mxu0 %v461
    %549 = vmatprep.subr.mxu0 %v460
    %550 = vmatpush1.msra.mxu0 %v459
    %551 = vmatprep.subr.mxu0 %v458
    %552 = vmatpush1.msra.mxu0 %v457
    %553 = vmatprep.subr.mxu0 %v456
    %554 = vmatpush1.msra.mxu0 %v455
    %555 = vmatprep.subr.mxu0 %v454
    %556 = vmatpush1.msra.mxu0 %v453
    %557 = vmatprep.subr.mxu0 %v452
    %558 = vmatpush1.msra.mxu0 %v451
    %559 = vmatprep.subr.mxu0 %v450
    %560 = vmatpush1.msra.mxu0 %v449
    %561 = vmatprep.subr.mxu0 %v448
    %562 = vmatpush1.msra.mxu0 %v447
    %563 = vmatprep.subr.mxu0 %v446
    %564 = vmatpush1.msra.mxu0 %v445
    %565 = vmatprep.subr.mxu0 %v444
    %566 = vmatpush1.msra.mxu0 %v443
    %567 = vmatprep.subr.mxu0 %v442
    %568 = vmatpush1.msra.mxu0 %v441
    %569 = vmatprep.subr.mxu0 %v440
    %570 = vmatpush1.msra.mxu0 %v439
    %571 = vmatprep.subr.mxu0 %v438
    %572 = vmatpush1.msra.mxu0 %v437
    %573 = vmatprep.subr.mxu0 %v436
    %574 = vmatpush1.msra.mxu0 %v435
    %575 = vmatprep.subr.mxu0 %v498
    %576 = vmatpush2.msra.mxu0 %v497
    %577 = vmatprep.subr.mxu0 %v496
    %578 = vmatpush2.msra.mxu0 %v495
    %579 = vmatprep.subr.mxu0 %v494
    %580 = vmatpush2.msra.mxu0 %v493
    %581 = vmatprep.subr.mxu0 %v492
    %582 = vmatpush2.msra.mxu0 %v491
    %583 = vmatprep.subr.mxu0 %v490
    %584 = vmatpush2.msra.mxu0 %v489
    %585 = vmatprep.subr.mxu0 %v488
    %586 = vmatpush2.msra.mxu0 %v487
    %587 = vmatprep.subr.mxu0 %v486
    %588 = vmatpush2.msra.mxu0 %v485
    %589 = vmatprep.subr.mxu0 %v484
    %590 = vmatpush2.msra.mxu0 %v483
    %591 = vmatprep.subr.mxu0 %v482
    %592 = vmatpush2.msra.mxu0 %v481
    %593 = vmatprep.subr.mxu0 %v480
    %594 = vmatpush2.msra.mxu0 %v479
    %595 = vmatprep.subr.mxu0 %v478
    %596 = vmatpush2.msra.mxu0 %v477
    %597 = vmatprep.subr.mxu0 %v476
    %598 = vmatpush2.msra.mxu0 %v475
    %599 = vmatprep.subr.mxu0 %v474
    %600 = vmatpush2.msra.mxu0 %v473
    %601 = vmatprep.subr.mxu0 %v472
    %602 = vmatpush2.msra.mxu0 %v471
    %603 = vmatprep.subr.mxu0 %v470
    %604 = vmatpush2.msra.mxu0 %v469
    %605 = vmatprep.subr.mxu0 %v468
    %606 = vmatpush2.msra.mxu0 %v467
    %607 = vmatprep.mubr.f32.mxu0 %v424
    %608 = vmatmul.mubr.f32.gmra.mxu0 %v423
    %v609 = vpop.f32.mrf.mxu0
    %v610 = vadd.f32 %v536, %v609
    %v611 = vpop.f32.mrf.mxu0
    %v612 = vadd.f32 %v540, %v611
    %613 = vmatprep.mubr.f32.mxu0 %v427
    %614 = vmatmul.mubr.f32.gmra.mxu0 %v426
    %v615 = vpop.f32.mrf.mxu0
    %v616 = vadd.f32 %v536, %v615
    %v617 = vpop.f32.mrf.mxu0
    %v618 = vadd.f32 %v540, %v617
    %619 = vmatprep.mubr.f32.mxu0 %v430
    %620 = vmatmul.mubr.f32.gmra.mxu0 %v429
    %v621 = vpop.f32.mrf.mxu0
    %v622 = vadd.f32 %v536, %v621
    %v623 = vpop.f32.mrf.mxu0
    %v624 = vadd.f32 %v540, %v623
    %625 = vmatprep.mubr.f32.mxu0 %v433
    %626 = vmatmul.mubr.f32.gmra.mxu0 %v432
    %v627 = vpop.f32.mrf.mxu0
    %v628 = vadd.f32 %v536, %v627
    %v629 = vpop.f32.mrf.mxu0
    %v630 = vadd.f32 %v540, %v629
    %631 = vdwg.mxu0
    %632 = vmatprep.subr.mxu0 %v530
    %633 = vmatpush1.msra.mxu0 %v529
    %634 = vmatprep.subr.mxu0 %v528
    %635 = vmatpush1.msra.mxu0 %v527
    %636 = vmatprep.subr.mxu0 %v526
    %637 = vmatpush1.msra.mxu0 %v525
    %638 = vmatprep.subr.mxu0 %v524
    %639 = vmatpush1.msra.mxu0 %v523
    %640 = vmatprep.subr.mxu0 %v522
    %641 = vmatpush1.msra.mxu0 %v521
    %642 = vmatprep.subr.mxu0 %v520
    %643 = vmatpush1.msra.mxu0 %v519
    %644 = vmatprep.subr.mxu0 %v518
    %645 = vmatpush1.msra.mxu0 %v517
    %646 = vmatprep.subr.mxu0 %v516
    %647 = vmatpush1.msra.mxu0 %v515
    %648 = vmatprep.subr.mxu0 %v514
    %649 = vmatpush1.msra.mxu0 %v513
    %650 = vmatprep.subr.mxu0 %v512
    %651 = vmatpush1.msra.mxu0 %v511
    %652 = vmatprep.subr.mxu0 %v510
    %653 = vmatpush1.msra.mxu0 %v509
    %654 = vmatprep.subr.mxu0 %v508
    %655 = vmatpush1.msra.mxu0 %v507
    %656 = vmatprep.subr.mxu0 %v506
    %657 = vmatpush1.msra.mxu0 %v505
    %658 = vmatprep.subr.mxu0 %v504
    %659 = vmatpush1.msra.mxu0 %v503
    %660 = vmatprep.subr.mxu0 %v502
    %661 = vmatpush1.msra.mxu0 %v501
    %662 = vmatprep.subr.mxu0 %v500
    %663 = vmatpush1.msra.mxu0 %v499
    %664 = vmatprep.subr.mxu0 0.0
    %665 = vmatpush2.msra.mxu0 0.0
    %666 = vmatprep.subr.mxu0 0.0
    %667 = vmatpush2.msra.mxu0 0.0
    %668 = vmatprep.subr.mxu0 0.0
    %669 = vmatpush2.msra.mxu0 0.0
    %670 = vmatprep.subr.mxu0 0.0
    %671 = vmatpush2.msra.mxu0 0.0
    %672 = vmatprep.subr.mxu0 0.0
    %673 = vmatpush2.msra.mxu0 0.0
    %674 = vmatprep.subr.mxu0 0.0
    %675 = vmatpush2.msra.mxu0 0.0
    %676 = vmatprep.subr.mxu0 0.0
    %677 = vmatpush2.msra.mxu0 0.0
    %678 = vmatprep.subr.mxu0 0.0
    %679 = vmatpush2.msra.mxu0 0.0
    %680 = vmatprep.subr.mxu0 0.0
    %681 = vmatpush2.msra.mxu0 0.0
    %682 = vmatprep.subr.mxu0 0.0
    %683 = vmatpush2.msra.mxu0 0.0
    %684 = vmatprep.subr.mxu0 0.0
    %685 = vmatpush2.msra.mxu0 0.0
    %686 = vmatprep.subr.mxu0 0.0
    %687 = vmatpush2.msra.mxu0 0.0
    %688 = vmatprep.subr.mxu0 0.0
    %689 = vmatpush2.msra.mxu0 0.0
    %690 = vmatprep.subr.mxu0 0.0
    %691 = vmatpush2.msra.mxu0 0.0
    %692 = vmatprep.subr.mxu0 0.0
    %693 = vmatpush2.msra.mxu0 0.0
    %694 = vmatprep.subr.mxu0 0.0
    %695 = vmatpush2.msra.mxu0 0.0
    %696 = vmatprep.mubr.f32.mxu0 0.0
    %697 = vmatmul.mubr.f32.gmra.mxu0 %v425
    %v698 = vpop.f32.mrf.mxu0
    %v699 = vadd.f32 %v610, %v698
    %v700 = vpop.f32.mrf.mxu0
    %v701 = vadd.f32 %v612, %v700
    %702 = vmatprep.mubr.f32.mxu0 0.0
    %703 = vmatmul.mubr.f32.gmra.mxu0 %v428
    %v704 = vpop.f32.mrf.mxu0
    %v705 = vadd.f32 %v616, %v704
    %v706 = vpop.f32.mrf.mxu0
    %v707 = vadd.f32 %v618, %v706
    %708 = vmatprep.mubr.f32.mxu0 0.0
    %709 = vmatmul.mubr.f32.gmra.mxu0 %v431
    %v710 = vpop.f32.mrf.mxu0
    %v711 = vadd.f32 %v622, %v710
    %v712 = vpop.f32.mrf.mxu0
    %v713 = vadd.f32 %v624, %v712
    %714 = vmatprep.mubr.f32.mxu0 0.0
    %715 = vmatmul.mubr.f32.gmra.mxu0 %v434
    %v716 = vpop.f32.mrf.mxu0
    %v717 = vadd.f32 %v628, %v716
    %v718 = vpop.f32.mrf.mxu0
    %v719 = vadd.f32 %v630, %v718
    %720 = vdwg.mxu0
    %v721 = vmax.f32 %v699, 0.0
    %v722 = vmax.f32 %v701, 0.0
    %v723 = vmax.f32 %v705, 0.0
    %v724 = vmax.f32 %v707, 0.0
    %v725 = vmax.f32 %v711, 0.0
    %v726 = vmax.f32 %v713, 0.0
    %v727 = vmax.f32 %v717, 0.0
    %v728 = vmax.f32 %v719, 0.0
    %v729 = vmax.f32 %v721, %v722
    %v730 = vmax.f32 %v723, %v724
    %v731 = vmax.f32 %v725, %v726
    %v732 = vmax.f32 %v727, %v728
    %733 = vst [vmem:[#allocation5] sm:$0x1] 0.0
    %734 = vst [vmem:[#allocation5 + $0xd] sm:$0x1] 0.0
    %735 = vst [vmem:[#allocation5 + $0x1] sm:$0xff] %v729
    %736 = vst [vmem:[#allocation5 + $0x9] sm:$0xf] %v730
    %737 = vst [vmem:[#allocation5 + $0x10] sm:$0x1] 0.0
    %738 = vst [vmem:[#allocation5 + $0x1d] sm:$0x1] 0.0
    %739 = vst [vmem:[#allocation5 + $0x11] sm:$0xff] %v731
    %740 = vst [vmem:[#allocation5 + $0x19] sm:$0xf] %v732
    %v741 = vld [vmem:[#allocation5] ss:$2 sm:$0x7f]
    %s742 = scalar_lea.vmem [#allocation5], 1
    %v743 = vld [vmem:[%s742] ss:$2 sm:$0x7f]
    %v744 = vmax.f32 %v741, %v743
    %745 = vst [vmem:[#allocation6] sm:$0x1] %v744
    %v748 = vunpack.c.l.s4 1983009808
    %v749 = vunpack.c.0.s8 %v748
    %v750 = vlaneseq
    %v751 = vshrl.u32 %v750, 7
    %v752 = vsub.s32 %v749, %v751
    %v753 = vrot.slane %v744, %v752
    %v754 = vrot.slane %v753, 7
    %v755 = vrot.slane %v754, 2
    %757 = vst [vmem:[#allocation6 + $0x2] sm:$0x1] %v755
    %v758 = vcombine.high %v753, %v753
    %760 = vst [vmem:[#allocation6 + $0x4] sm:$0x1] %v758
    %v761 = vrot.slane %v758, 7
    %v762 = vrot.slane %v761, 2
    %764 = vst [vmem:[#allocation6 + $0x6] sm:$0x1] %v762
    %v765 = vcombine.high %v744, %v744
    %v767 = vunpack.c.l.s4 1983009808
    %v768 = vunpack.c.0.s8 %v767
    %v769 = vlaneseq
    %v770 = vshrl.u32 %v769, 7
    %v771 = vsub.s32 %v768, %v770
    %v772 = vrot.slane %v765, %v771
    %774 = vst [vmem:[#allocation6 + $0x8] sm:$0x1] %v772
    %v775 = vrot.slane %v772, 7
    %v776 = vrot.slane %v775, 2
    %778 = vst [vmem:[#allocation6 + $0xa] sm:$0x1] %v776
    %v779 = vcombine.high %v772, %v772
    %781 = vst [vmem:[#allocation6 + $0xc] sm:$0x1] %v779
    %s782 = scalar_lea.vmem [#allocation5], 16
    %v783 = vld [vmem:[%s782] ss:$2 sm:$0x7f]
    %s784 = scalar_lea.vmem [#allocation5], 17
    %v785 = vld [vmem:[%s784] ss:$2 sm:$0x7f]
    %v786 = vmax.f32 %v783, %v785
    %787 = vst [vmem:[#allocation6 + $0x1] sm:$0x1] %v786
    %v790 = vunpack.c.l.s4 1983009808
    %v791 = vunpack.c.0.s8 %v790
    %v792 = vlaneseq
    %v793 = vshrl.u32 %v792, 7
    %v794 = vsub.s32 %v791, %v793
    %v795 = vrot.slane %v786, %v794
    %v796 = vrot.slane %v795, 7
    %v797 = vrot.slane %v796, 2
    %799 = vst [vmem:[#allocation6 + $0x3] sm:$0x1] %v797
    %v800 = vcombine.high %v795, %v795
    %802 = vst [vmem:[#allocation6 + $0x5] sm:$0x1] %v800
    %v803 = vrot.slane %v800, 7
    %v804 = vrot.slane %v803, 2
    %806 = vst [vmem:[#allocation6 + $0x7] sm:$0x1] %v804
    %v807 = vcombine.high %v786, %v786
    %v809 = vunpack.c.l.s4 1983009808
    %v810 = vunpack.c.0.s8 %v809
    %v811 = vlaneseq
    %v812 = vshrl.u32 %v811, 7
    %v813 = vsub.s32 %v810, %v812
    %v814 = vrot.slane %v807, %v813
    %816 = vst [vmem:[#allocation6 + $0x9] sm:$0x1] %v814
    %v817 = vrot.slane %v814, 7
    %v818 = vrot.slane %v817, 2
    %820 = vst [vmem:[#allocation6 + $0xb] sm:$0x1] %v818
    %v821 = vcombine.high %v814, %v814
    %823 = vst [vmem:[#allocation6 + $0xd] sm:$0x1] %v821
    %v824 = vld [vmem:[#allocation6] sm:$0xff]
    %v825 = vld [vmem:[#allocation6 + $0x8] sm:$0x3f]
    %v826 = vld [vmem:[#allocation10] sm:$0xff]
    %v827 = vld [vmem:[#allocation10 + $0x8] sm:$0xff]
    %v828 = vld [vmem:[#allocation10 + $0x10] sm:$0xff]
    %v829 = vld [vmem:[#allocation10 + $0x18] sm:$0xff]
    %v830 = vld [vmem:[#allocation10 + $0x20] sm:$0xff]
    %v831 = vld [vmem:[#allocation10 + $0x28] sm:$0xff]
    %v832 = vld [vmem:[#allocation10 + $0x30] sm:$0xff]
    %v833 = vld [vmem:[#allocation10 + $0x38] sm:$0xff]
    %v834 = vld [vmem:[#allocation10 + $0x40] sm:$0xff]
    %v835 = vld [vmem:[#allocation10 + $0x48] sm:$0xff]
    %v836 = vld [vmem:[#allocation10 + $0x50] sm:$0xff]
    %v837 = vld [vmem:[#allocation10 + $0x58] sm:$0xff]
    %v838 = vld [vmem:[#allocation10 + $0x60] sm:$0xff]
    %v839 = vld [vmem:[#allocation10 + $0x68] sm:$0xff]
    %v840 = vld [vmem:[#allocation10 + $0x70] sm:$0xff]
    %v841 = vld [vmem:[#allocation10 + $0x78] sm:$0xff]
    %v842 = vld [vmem:[#allocation10 + $0x80] sm:$0xff]
    %v843 = vld [vmem:[#allocation10 + $0x88] sm:$0xff]
    %v844 = vld [vmem:[#allocation10 + $0x90] sm:$0xff]
    %v845 = vld [vmem:[#allocation10 + $0x98] sm:$0xff]
    %v846 = vld [vmem:[#allocation10 + $0xa0] sm:$0xff]
    %v847 = vld [vmem:[#allocation10 + $0xa8] sm:$0xff]
    %v848 = vld [vmem:[#allocation10 + $0xb0] sm:$0xff]
    %v849 = vld [vmem:[#allocation10 + $0xb8] sm:$0xff]
    %v850 = vld [vmem:[#allocation10 + $0xc0] sm:$0xff]
    %v851 = vld [vmem:[#allocation10 + $0xc8] sm:$0xff]
    %v852 = vld [vmem:[#allocation10 + $0xd0] sm:$0xff]
    %v853 = vld [vmem:[#allocation10 + $0xd8] sm:$0xff]
    %v854 = vld [vmem:[#allocation10 + $0xe0] sm:$0xff]
    %v855 = vld [vmem:[#allocation10 + $0xe8] sm:$0xff]
    %v856 = vld [vmem:[#allocation10 + $0xf0] sm:$0xff]
    %v857 = vld [vmem:[#allocation10 + $0xf8] sm:$0xff]
    %v858 = vld [vmem:[#allocation10 + $0x100] sm:$0xff]
    %v859 = vld [vmem:[#allocation10 + $0x108] sm:$0xff]
    %v860 = vld [vmem:[#allocation10 + $0x110] sm:$0xff]
    %v861 = vld [vmem:[#allocation10 + $0x118] sm:$0xff]
    %v862 = vld [vmem:[#allocation10 + $0x120] sm:$0xff]
    %v863 = vld [vmem:[#allocation10 + $0x128] sm:$0xff]
    %v864 = vld [vmem:[#allocation10 + $0x130] sm:$0xff]
    %v865 = vld [vmem:[#allocation10 + $0x138] sm:$0xff]
    %v866 = vld [vmem:[#allocation10 + $0x140] sm:$0xff]
    %v867 = vld [vmem:[#allocation10 + $0x148] sm:$0xff]
    %v868 = vld [vmem:[#allocation10 + $0x150] sm:$0xff]
    %v869 = vld [vmem:[#allocation10 + $0x158] sm:$0xff]
    %v870 = vld [vmem:[#allocation10 + $0x160] sm:$0xff]
    %v871 = vld [vmem:[#allocation10 + $0x168] sm:$0xff]
    %v872 = vld [vmem:[#allocation10 + $0x170] sm:$0xff]
    %v873 = vld [vmem:[#allocation10 + $0x178] sm:$0xff]
    %v874 = vld [vmem:[#allocation10 + $0x180] sm:$0xff]
    %v875 = vld [vmem:[#allocation10 + $0x188] sm:$0xff]
    %v876 = vld [vmem:[#allocation10 + $0x190] sm:$0xff]
    %v877 = vld [vmem:[#allocation10 + $0x198] sm:$0xff]
    %v878 = vld [vmem:[#allocation10 + $0x1a0] sm:$0xff]
    %v879 = vld [vmem:[#allocation10 + $0x1a8] sm:$0xff]
    %v880 = vld [vmem:[#allocation10 + $0x1b0] sm:$0xff]
    %v881 = vld [vmem:[#allocation10 + $0x1b8] sm:$0xff]
    %v882 = vld [vmem:[#allocation10 + $0x1c0] sm:$0xff]
    %v883 = vld [vmem:[#allocation10 + $0x1c8] sm:$0xff]
    %v884 = vld [vmem:[#allocation10 + $0x1d0] sm:$0xff]
    %v885 = vld [vmem:[#allocation10 + $0x1d8] sm:$0xff]
    %v886 = vld [vmem:[#allocation10 + $0x1e0] sm:$0xff]
    %v887 = vld [vmem:[#allocation10 + $0x1e8] sm:$0xff]
    %v888 = vld [vmem:[#allocation10 + $0x1f0] sm:$0xff]
    %v889 = vld [vmem:[#allocation10 + $0x1f8] sm:$0xff]
    %v890 = vld [vmem:[#allocation10 + $0x200] sm:$0xff]
    %v891 = vld [vmem:[#allocation10 + $0x208] sm:$0xff]
    %v892 = vld [vmem:[#allocation10 + $0x210] sm:$0xff]
    %v893 = vld [vmem:[#allocation10 + $0x218] sm:$0xff]
    %v894 = vld [vmem:[#allocation10 + $0x220] sm:$0xff]
    %v895 = vld [vmem:[#allocation10 + $0x228] sm:$0xff]
    %v896 = vld [vmem:[#allocation10 + $0x230] sm:$0xff]
    %v897 = vld [vmem:[#allocation10 + $0x238] sm:$0xff]
    %v898 = vld [vmem:[#allocation10 + $0x240] sm:$0xff]
    %v899 = vld [vmem:[#allocation10 + $0x248] sm:$0xff]
    %v900 = vld [vmem:[#allocation10 + $0x250] sm:$0xff]
    %v901 = vld [vmem:[#allocation10 + $0x258] sm:$0xff]
    %v902 = vld [vmem:[#allocation10 + $0x260] sm:$0xff]
    %v903 = vld [vmem:[#allocation10 + $0x268] sm:$0xff]
    %v904 = vld [vmem:[#allocation10 + $0x270] sm:$0xff]
    %v905 = vld [vmem:[#allocation10 + $0x278] sm:$0xff]
    %v906 = vld [vmem:[#allocation10 + $0x280] sm:$0xff]
    %v907 = vld [vmem:[#allocation10 + $0x288] sm:$0xff]
    %v908 = vld [vmem:[#allocation10 + $0x290] sm:$0xff]
    %v909 = vld [vmem:[#allocation10 + $0x298] sm:$0xff]
    %v910 = vld [vmem:[#allocation10 + $0x2a0] sm:$0xff]
    %v911 = vld [vmem:[#allocation10 + $0x2a8] sm:$0xff]
    %v912 = vld [vmem:[#allocation10 + $0x2b0] sm:$0xff]
    %v913 = vld [vmem:[#allocation10 + $0x2b8] sm:$0xff]
    %v914 = vld [vmem:[#allocation10 + $0x2c0] sm:$0xff]
    %v915 = vld [vmem:[#allocation10 + $0x2c8] sm:$0xff]
    %v916 = vld [vmem:[#allocation10 + $0x2d0] sm:$0xff]
    %v917 = vld [vmem:[#allocation10 + $0x2d8] sm:$0xff]
    %v918 = vld [vmem:[#allocation10 + $0x2e0] sm:$0xff]
    %v919 = vld [vmem:[#allocation10 + $0x2e8] sm:$0xff]
    %v920 = vld [vmem:[#allocation10 + $0x2f0] sm:$0xff]
    %v921 = vld [vmem:[#allocation10 + $0x2f8] sm:$0xff]
    %v922 = vld [vmem:[#allocation10 + $0x300] sm:$0xff]
    %v923 = vld [vmem:[#allocation10 + $0x308] sm:$0xff]
    %v924 = vld [vmem:[#allocation10 + $0x310] sm:$0xff]
    %v925 = vld [vmem:[#allocation10 + $0x318] sm:$0xff]
    %v926 = vld [vmem:[#allocation10 + $0x320] sm:$0xff]
    %v927 = vld [vmem:[#allocation10 + $0x328] sm:$0xff]
    %v928 = vld [vmem:[#allocation10 + $0x330] sm:$0xff]
    %v929 = vld [vmem:[#allocation10 + $0x338] sm:$0xff]
    %v930 = vld [vmem:[#allocation10 + $0x340] sm:$0xff]
    %v931 = vld [vmem:[#allocation10 + $0x348] sm:$0xff]
    %v932 = vld [vmem:[#allocation10 + $0x350] sm:$0xff]
    %v933 = vld [vmem:[#allocation10 + $0x358] sm:$0xff]
    %v934 = vld [vmem:[#allocation10 + $0x360] sm:$0xff]
    %v935 = vld [vmem:[#allocation10 + $0x368] sm:$0xff]
    %v936 = vld [vmem:[#allocation10 + $0x370] sm:$0xff]
    %v937 = vld [vmem:[#allocation10 + $0x378] sm:$0xff]
    %v938 = vld [vmem:[%s6] sm:$0x1]
    %v940 = vlaneseq
    %v941 = vshrl.u32 %v940, 7
    %v942 = vsub.s32 0, %v941
    %v943 = vrot.slane %v938, %v942
    %v947 = vcombine.high %v824, %v824
    %v949 = vunpack.c.l.s4 1983009808
    %v950 = vunpack.c.0.s8 %v949
    %v951 = vlaneseq
    %v952 = vshrl.u32 %v951, 7
    %v953 = vsub.s32 %v950, %v952
    %v954 = vrot.slane %v824, %v953
    %v956 = vunpack.c.l.s4 1983009808
    %v957 = vunpack.c.0.s8 %v956
    %v958 = vlaneseq
    %v959 = vshrl.u32 %v958, 7
    %v960 = vsub.s32 %v957, %v959
    %v961 = vrot.slane %v947, %v960
    %v962 = vcombine.high %v954, %v954
    %v963 = vcombine.high %v961, %v961
    %v964 = vcombine.high %v825, %v825
    %v966 = vunpack.c.l.s4 1983009808
    %v967 = vunpack.c.0.s8 %v966
    %v968 = vlaneseq
    %v969 = vshrl.u32 %v968, 7
    %v970 = vsub.s32 %v967, %v969
    %v971 = vrot.slane %v825, %v970
    %v973 = vunpack.c.l.s4 1983009808
    %v974 = vunpack.c.0.s8 %v973
    %v975 = vlaneseq
    %v976 = vshrl.u32 %v975, 7
    %v977 = vsub.s32 %v974, %v976
    %v978 = vrot.slane %v964, %v977
    %v979 = vcombine.high %v971, %v971
    %987 = vmatprep.subr.mxu0 0.0
    %988 = vmatpush1.msra.mxu0 %v841
    %989 = vmatprep.subr.mxu0 0.0
    %990 = vmatpush1.msra.mxu0 %v840
    %991 = vmatprep.subr.mxu0 0.0
    %992 = vmatpush1.msra.mxu0 %v839
    %993 = vmatprep.subr.mxu0 0.0
    %994 = vmatpush1.msra.mxu0 %v838
    %995 = vmatprep.subr.mxu0 0.0
    %996 = vmatpush1.msra.mxu0 %v837
    %997 = vmatprep.subr.mxu0 0.0
    %998 = vmatpush1.msra.mxu0 %v836
    %999 = vmatprep.subr.mxu0 0.0
    %1000 = vmatpush1.msra.mxu0 %v835
    %1001 = vmatprep.subr.mxu0 0.0
    %1002 = vmatpush1.msra.mxu0 %v834
    %1003 = vmatprep.subr.mxu0 0.0
    %1004 = vmatpush1.msra.mxu0 %v833
    %1005 = vmatprep.subr.mxu0 0.0
    %1006 = vmatpush1.msra.mxu0 %v832
    %1007 = vmatprep.subr.mxu0 0.0
    %1008 = vmatpush1.msra.mxu0 %v831
    %1009 = vmatprep.subr.mxu0 0.0
    %1010 = vmatpush1.msra.mxu0 %v830
    %1011 = vmatprep.subr.mxu0 0.0
    %1012 = vmatpush1.msra.mxu0 %v829
    %1013 = vmatprep.subr.mxu0 0.0
    %1014 = vmatpush1.msra.mxu0 %v828
    %1015 = vmatprep.subr.mxu0 0.0
    %1016 = vmatpush1.msra.mxu0 %v827
    %1017 = vmatprep.subr.mxu0 0.0
    %1018 = vmatpush1.msra.mxu0 %v826
    %1019 = vmatprep.subr.mxu0 0.0
    %1020 = vmatpush2.msra.mxu0 %v857
    %1021 = vmatprep.subr.mxu0 0.0
    %1022 = vmatpush2.msra.mxu0 %v856
    %1023 = vmatprep.subr.mxu0 0.0
    %1024 = vmatpush2.msra.mxu0 %v855
    %1025 = vmatprep.subr.mxu0 0.0
    %1026 = vmatpush2.msra.mxu0 %v854
    %1027 = vmatprep.subr.mxu0 0.0
    %1028 = vmatpush2.msra.mxu0 %v853
    %1029 = vmatprep.subr.mxu0 0.0
    %1030 = vmatpush2.msra.mxu0 %v852
    %1031 = vmatprep.subr.mxu0 0.0
    %1032 = vmatpush2.msra.mxu0 %v851
    %1033 = vmatprep.subr.mxu0 0.0
    %1034 = vmatpush2.msra.mxu0 %v850
    %1035 = vmatprep.subr.mxu0 0.0
    %1036 = vmatpush2.msra.mxu0 %v849
    %1037 = vmatprep.subr.mxu0 0.0
    %1038 = vmatpush2.msra.mxu0 %v848
    %1039 = vmatprep.subr.mxu0 0.0
    %1040 = vmatpush2.msra.mxu0 %v847
    %1041 = vmatprep.subr.mxu0 0.0
    %1042 = vmatpush2.msra.mxu0 %v846
    %1043 = vmatprep.subr.mxu0 0.0
    %1044 = vmatpush2.msra.mxu0 %v845
    %1045 = vmatprep.subr.mxu0 0.0
    %1046 = vmatpush2.msra.mxu0 %v844
    %1047 = vmatprep.subr.mxu0 0.0
    %1048 = vmatpush2.msra.mxu0 %v843
    %1049 = vmatprep.subr.mxu0 0.0
    %1050 = vmatpush2.msra.mxu0 %v842
    %1051 = vmatprep.mubr.f32.mxu0 %v962
    %1052 = vmatmul.mubr.f32.gmra.mxu0 %v954
    %v1053 = vpop.f32.mrf.mxu0
    %v1054 = vadd.f32 %v943, %v1053
    %v1055 = vpop.f32.mrf.mxu0
    %1056 = vdwg.mxu0
    %1057 = vmatprep.subr.mxu0 0.0
    %1058 = vmatpush1.msra.mxu0 %v873
    %1059 = vmatprep.subr.mxu0 0.0
    %1060 = vmatpush1.msra.mxu0 %v872
    %1061 = vmatprep.subr.mxu0 0.0
    %1062 = vmatpush1.msra.mxu0 %v871
    %1063 = vmatprep.subr.mxu0 0.0
    %1064 = vmatpush1.msra.mxu0 %v870
    %1065 = vmatprep.subr.mxu0 0.0
    %1066 = vmatpush1.msra.mxu0 %v869
    %1067 = vmatprep.subr.mxu0 0.0
    %1068 = vmatpush1.msra.mxu0 %v868
    %1069 = vmatprep.subr.mxu0 0.0
    %1070 = vmatpush1.msra.mxu0 %v867
    %1071 = vmatprep.subr.mxu0 0.0
    %1072 = vmatpush1.msra.mxu0 %v866
    %1073 = vmatprep.subr.mxu0 0.0
    %1074 = vmatpush1.msra.mxu0 %v865
    %1075 = vmatprep.subr.mxu0 0.0
    %1076 = vmatpush1.msra.mxu0 %v864
    %1077 = vmatprep.subr.mxu0 0.0
    %1078 = vmatpush1.msra.mxu0 %v863
    %1079 = vmatprep.subr.mxu0 0.0
    %1080 = vmatpush1.msra.mxu0 %v862
    %1081 = vmatprep.subr.mxu0 0.0
    %1082 = vmatpush1.msra.mxu0 %v861
    %1083 = vmatprep.subr.mxu0 0.0
    %1084 = vmatpush1.msra.mxu0 %v860
    %1085 = vmatprep.subr.mxu0 0.0
    %1086 = vmatpush1.msra.mxu0 %v859
    %1087 = vmatprep.subr.mxu0 0.0
    %1088 = vmatpush1.msra.mxu0 %v858
    %1089 = vmatprep.subr.mxu0 0.0
    %1090 = vmatpush2.msra.mxu0 %v889
    %1091 = vmatprep.subr.mxu0 0.0
    %1092 = vmatpush2.msra.mxu0 %v888
    %1093 = vmatprep.subr.mxu0 0.0
    %1094 = vmatpush2.msra.mxu0 %v887
    %1095 = vmatprep.subr.mxu0 0.0
    %1096 = vmatpush2.msra.mxu0 %v886
    %1097 = vmatprep.subr.mxu0 0.0
    %1098 = vmatpush2.msra.mxu0 %v885
    %1099 = vmatprep.subr.mxu0 0.0
    %1100 = vmatpush2.msra.mxu0 %v884
    %1101 = vmatprep.subr.mxu0 0.0
    %1102 = vmatpush2.msra.mxu0 %v883
    %1103 = vmatprep.subr.mxu0 0.0
    %1104 = vmatpush2.msra.mxu0 %v882
    %1105 = vmatprep.subr.mxu0 0.0
    %1106 = vmatpush2.msra.mxu0 %v881
    %1107 = vmatprep.subr.mxu0 0.0
    %1108 = vmatpush2.msra.mxu0 %v880
    %1109 = vmatprep.subr.mxu0 0.0
    %1110 = vmatpush2.msra.mxu0 %v879
    %1111 = vmatprep.subr.mxu0 0.0
    %1112 = vmatpush2.msra.mxu0 %v878
    %1113 = vmatprep.subr.mxu0 0.0
    %1114 = vmatpush2.msra.mxu0 %v877
    %1115 = vmatprep.subr.mxu0 0.0
    %1116 = vmatpush2.msra.mxu0 %v876
    %1117 = vmatprep.subr.mxu0 0.0
    %1118 = vmatpush2.msra.mxu0 %v875
    %1119 = vmatprep.subr.mxu0 0.0
    %1120 = vmatpush2.msra.mxu0 %v874
    %1121 = vmatprep.mubr.f32.mxu0 %v963
    %1122 = vmatmul.mubr.f32.gmra.mxu0 %v961
    %v1123 = vpop.f32.mrf.mxu0
    %v1124 = vadd.f32 %v1054, %v1123
    %v1125 = vpop.f32.mrf.mxu0
    %1126 = vdwg.mxu0
    %1127 = vmatprep.subr.mxu0 0.0
    %1128 = vmatpush1.msra.mxu0 %v905
    %1129 = vmatprep.subr.mxu0 0.0
    %1130 = vmatpush1.msra.mxu0 %v904
    %1131 = vmatprep.subr.mxu0 0.0
    %1132 = vmatpush1.msra.mxu0 %v903
    %1133 = vmatprep.subr.mxu0 0.0
    %1134 = vmatpush1.msra.mxu0 %v902
    %1135 = vmatprep.subr.mxu0 0.0
    %1136 = vmatpush1.msra.mxu0 %v901
    %1137 = vmatprep.subr.mxu0 0.0
    %1138 = vmatpush1.msra.mxu0 %v900
    %1139 = vmatprep.subr.mxu0 0.0
    %1140 = vmatpush1.msra.mxu0 %v899
    %1141 = vmatprep.subr.mxu0 0.0
    %1142 = vmatpush1.msra.mxu0 %v898
    %1143 = vmatprep.subr.mxu0 0.0
    %1144 = vmatpush1.msra.mxu0 %v897
    %1145 = vmatprep.subr.mxu0 0.0
    %1146 = vmatpush1.msra.mxu0 %v896
    %1147 = vmatprep.subr.mxu0 0.0
    %1148 = vmatpush1.msra.mxu0 %v895
    %1149 = vmatprep.subr.mxu0 0.0
    %1150 = vmatpush1.msra.mxu0 %v894
    %1151 = vmatprep.subr.mxu0 0.0
    %1152 = vmatpush1.msra.mxu0 %v893
    %1153 = vmatprep.subr.mxu0 0.0
    %1154 = vmatpush1.msra.mxu0 %v892
    %1155 = vmatprep.subr.mxu0 0.0
    %1156 = vmatpush1.msra.mxu0 %v891
    %1157 = vmatprep.subr.mxu0 0.0
    %1158 = vmatpush1.msra.mxu0 %v890
    %1159 = vmatprep.subr.mxu0 0.0
    %1160 = vmatpush2.msra.mxu0 %v921
    %1161 = vmatprep.subr.mxu0 0.0
    %1162 = vmatpush2.msra.mxu0 %v920
    %1163 = vmatprep.subr.mxu0 0.0
    %1164 = vmatpush2.msra.mxu0 %v919
    %1165 = vmatprep.subr.mxu0 0.0
    %1166 = vmatpush2.msra.mxu0 %v918
    %1167 = vmatprep.subr.mxu0 0.0
    %1168 = vmatpush2.msra.mxu0 %v917
    %1169 = vmatprep.subr.mxu0 0.0
    %1170 = vmatpush2.msra.mxu0 %v916
    %1171 = vmatprep.subr.mxu0 0.0
    %1172 = vmatpush2.msra.mxu0 %v915
    %1173 = vmatprep.subr.mxu0 0.0
    %1174 = vmatpush2.msra.mxu0 %v914
    %1175 = vmatprep.subr.mxu0 0.0
    %1176 = vmatpush2.msra.mxu0 %v913
    %1177 = vmatprep.subr.mxu0 0.0
    %1178 = vmatpush2.msra.mxu0 %v912
    %1179 = vmatprep.subr.mxu0 0.0
    %1180 = vmatpush2.msra.mxu0 %v911
    %1181 = vmatprep.subr.mxu0 0.0
    %1182 = vmatpush2.msra.mxu0 %v910
    %1183 = vmatprep.subr.mxu0 0.0
    %1184 = vmatpush2.msra.mxu0 %v909
    %1185 = vmatprep.subr.mxu0 0.0
    %1186 = vmatpush2.msra.mxu0 %v908
    %1187 = vmatprep.subr.mxu0 0.0
    %1188 = vmatpush2.msra.mxu0 %v907
    %1189 = vmatprep.subr.mxu0 0.0
    %1190 = vmatpush2.msra.mxu0 %v906
    %1191 = vmatprep.mubr.f32.mxu0 %v979
    %1192 = vmatmul.mubr.f32.gmra.mxu0 %v971
    %v1193 = vpop.f32.mrf.mxu0
    %v1194 = vadd.f32 %v1124, %v1193
    %v1195 = vpop.f32.mrf.mxu0
    %1196 = vdwg.mxu0
    %1197 = vmatprep.subr.mxu0 0.0
    %1198 = vmatpush1.msra.mxu0 %v937
    %1199 = vmatprep.subr.mxu0 0.0
    %1200 = vmatpush1.msra.mxu0 %v936
    %1201 = vmatprep.subr.mxu0 0.0
    %1202 = vmatpush1.msra.mxu0 %v935
    %1203 = vmatprep.subr.mxu0 0.0
    %1204 = vmatpush1.msra.mxu0 %v934
    %1205 = vmatprep.subr.mxu0 0.0
    %1206 = vmatpush1.msra.mxu0 %v933
    %1207 = vmatprep.subr.mxu0 0.0
    %1208 = vmatpush1.msra.mxu0 %v932
    %1209 = vmatprep.subr.mxu0 0.0
    %1210 = vmatpush1.msra.mxu0 %v931
    %1211 = vmatprep.subr.mxu0 0.0
    %1212 = vmatpush1.msra.mxu0 %v930
    %1213 = vmatprep.subr.mxu0 0.0
    %1214 = vmatpush1.msra.mxu0 %v929
    %1215 = vmatprep.subr.mxu0 0.0
    %1216 = vmatpush1.msra.mxu0 %v928
    %1217 = vmatprep.subr.mxu0 0.0
    %1218 = vmatpush1.msra.mxu0 %v927
    %1219 = vmatprep.subr.mxu0 0.0
    %1220 = vmatpush1.msra.mxu0 %v926
    %1221 = vmatprep.subr.mxu0 0.0
    %1222 = vmatpush1.msra.mxu0 %v925
    %1223 = vmatprep.subr.mxu0 0.0
    %1224 = vmatpush1.msra.mxu0 %v924
    %1225 = vmatprep.subr.mxu0 0.0
    %1226 = vmatpush1.msra.mxu0 %v923
    %1227 = vmatprep.subr.mxu0 0.0
    %1228 = vmatpush1.msra.mxu0 %v922
    %1229 = vmatprep.subr.mxu0 0.0
    %1230 = vmatpush2.msra.mxu0 0.0
    %1231 = vmatprep.subr.mxu0 0.0
    %1232 = vmatpush2.msra.mxu0 0.0
    %1233 = vmatprep.subr.mxu0 0.0
    %1234 = vmatpush2.msra.mxu0 0.0
    %1235 = vmatprep.subr.mxu0 0.0
    %1236 = vmatpush2.msra.mxu0 0.0
    %1237 = vmatprep.subr.mxu0 0.0
    %1238 = vmatpush2.msra.mxu0 0.0
    %1239 = vmatprep.subr.mxu0 0.0
    %1240 = vmatpush2.msra.mxu0 0.0
    %1241 = vmatprep.subr.mxu0 0.0
    %1242 = vmatpush2.msra.mxu0 0.0
    %1243 = vmatprep.subr.mxu0 0.0
    %1244 = vmatpush2.msra.mxu0 0.0
    %1245 = vmatprep.subr.mxu0 0.0
    %1246 = vmatpush2.msra.mxu0 0.0
    %1247 = vmatprep.subr.mxu0 0.0
    %1248 = vmatpush2.msra.mxu0 0.0
    %1249 = vmatprep.subr.mxu0 0.0
    %1250 = vmatpush2.msra.mxu0 0.0
    %1251 = vmatprep.subr.mxu0 0.0
    %1252 = vmatpush2.msra.mxu0 0.0
    %1253 = vmatprep.subr.mxu0 0.0
    %1254 = vmatpush2.msra.mxu0 0.0
    %1255 = vmatprep.subr.mxu0 0.0
    %1256 = vmatpush2.msra.mxu0 0.0
    %1257 = vmatprep.subr.mxu0 0.0
    %1258 = vmatpush2.msra.mxu0 0.0
    %1259 = vmatprep.subr.mxu0 0.0
    %1260 = vmatpush2.msra.mxu0 0.0
    %1261 = vmatprep.mubr.f32.mxu0 0.0
    %1262 = vmatmul.mubr.f32.gmra.mxu0 %v978
    %v1263 = vpop.f32.mrf.mxu0
    %v1264 = vadd.f32 %v1194, %v1263
    %v1265 = vpop.f32.mrf.mxu0
    %1266 = vdwg.mxu0
    %v1267 = vld [vmem:[%s7] sm:$0xff]
    %v1268 = vld [vmem:[%s7 + $0x8] sm:$0xff]
    %v1269 = vld [vmem:[%s7 + $0x10] sm:$0xff]
    %v1270 = vld [vmem:[%s7 + $0x18] sm:$0xff]
    %v1271 = vld [vmem:[%s7 + $0x20] sm:$0xff]
    %v1272 = vld [vmem:[%s7 + $0x28] sm:$0xff]
    %v1273 = vld [vmem:[%s7 + $0x30] sm:$0x3]
    %v1274 = vld [vmem:[%s8] sm:$0x1]
    %v1276 = vlaneseq
    %v1277 = vshrl.u32 %v1276, 7
    %v1278 = vsub.s32 0, %v1277
    %v1279 = vrot.slane %v1274, %v1278
    %vm1281 = vcmask 408576
    %v1283 = vsel %vm1281, %v1264, 0
    %v1286 = vsel %vm70, %v1273, 0
    %1288 = vmatprep.subr.mxu0 0.0
    %1289 = vmatpush1.msra.mxu0 0.0
    %1290 = vmatprep.subr.mxu0 0.0
    %1291 = vmatpush1.msra.mxu0 0.0
    %1292 = vmatprep.subr.mxu0 0.0
    %1293 = vmatpush1.msra.mxu0 0.0
    %1294 = vmatprep.subr.mxu0 0.0
    %1295 = vmatpush1.msra.mxu0 0.0
    %1296 = vmatprep.subr.mxu0 0.0
    %1297 = vmatpush1.msra.mxu0 0.0
    %1298 = vmatprep.subr.mxu0 0.0
    %1299 = vmatpush1.msra.mxu0 0.0
    %1300 = vmatprep.subr.mxu0 0.0
    %1301 = vmatpush1.msra.mxu0 0.0
    %1302 = vmatprep.subr.mxu0 0.0
    %1303 = vmatpush1.msra.mxu0 0.0
    %1304 = vmatprep.subr.mxu0 0.0
    %1305 = vmatpush1.msra.mxu0 0.0
    %1306 = vmatprep.subr.mxu0 0.0
    %1307 = vmatpush1.msra.mxu0 %v1286
    %1308 = vmatprep.subr.mxu0 0.0
    %1309 = vmatpush1.msra.mxu0 %v1272
    %1310 = vmatprep.subr.mxu0 0.0
    %1311 = vmatpush1.msra.mxu0 %v1271
    %1312 = vmatprep.subr.mxu0 0.0
    %1313 = vmatpush1.msra.mxu0 %v1270
    %1314 = vmatprep.subr.mxu0 0.0
    %1315 = vmatpush1.msra.mxu0 %v1269
    %1316 = vmatprep.subr.mxu0 0.0
    %1317 = vmatpush1.msra.mxu0 %v1268
    %1318 = vmatprep.subr.mxu0 0.0
    %1319 = vmatpush1.msra.mxu0 %v1267
    %1320 = vmatprep.subr.mxu0 0.0
    %1321 = vmatpush2.msra.mxu0 0.0
    %1322 = vmatprep.subr.mxu0 0.0
    %1323 = vmatpush2.msra.mxu0 0.0
    %1324 = vmatprep.subr.mxu0 0.0
    %1325 = vmatpush2.msra.mxu0 0.0
    %1326 = vmatprep.subr.mxu0 0.0
    %1327 = vmatpush2.msra.mxu0 0.0
    %1328 = vmatprep.subr.mxu0 0.0
    %1329 = vmatpush2.msra.mxu0 0.0
    %1330 = vmatprep.subr.mxu0 0.0
    %1331 = vmatpush2.msra.mxu0 0.0
    %1332 = vmatprep.subr.mxu0 0.0
    %1333 = vmatpush2.msra.mxu0 0.0
    %1334 = vmatprep.subr.mxu0 0.0
    %1335 = vmatpush2.msra.mxu0 0.0
    %1336 = vmatprep.subr.mxu0 0.0
    %1337 = vmatpush2.msra.mxu0 0.0
    %1338 = vmatprep.subr.mxu0 0.0
    %1339 = vmatpush2.msra.mxu0 0.0
    %1340 = vmatprep.subr.mxu0 0.0
    %1341 = vmatpush2.msra.mxu0 0.0
    %1342 = vmatprep.subr.mxu0 0.0
    %1343 = vmatpush2.msra.mxu0 0.0
    %1344 = vmatprep.subr.mxu0 0.0
    %1345 = vmatpush2.msra.mxu0 0.0
    %1346 = vmatprep.subr.mxu0 0.0
    %1347 = vmatpush2.msra.mxu0 0.0
    %1348 = vmatprep.subr.mxu0 0.0
    %1349 = vmatpush2.msra.mxu0 0.0
    %1350 = vmatprep.subr.mxu0 0.0
    %1351 = vmatpush2.msra.mxu0 0.0
    %1352 = vmatprep.mubr.f32.mxu0 0.0
    %1353 = vmatmul.mubr.f32.gmra.mxu0 %v1283
    %v1354 = vpop.f32.mrf.mxu0
    %v1355 = vadd.f32 %v1279, %v1354
    %v1356 = vpop.f32.mrf.mxu0
    %1357 = vdwg.mxu0
    %vm1358 = vcmask 74752
    %v1359 = vsel %vm1358, %v1355, -inf
    %1360 = vmax.xlane.f32.xlu0 %v1359
    %v1361 = vpop.xlane.xlu0 %1360
    %v1362 = vsub.f32 %v1355, %v1361
    %v1363 = vmul.f32 %v1362, 1.442695
    %v1364 = vpow.pop %v1363
    %v1365 = vsel %vm1358, %v1364, 0.0
    %1366 = vadd.xlane.f32.xlu0 %v1365
    %v1367 = vpop.xlane.xlu0 %1366
    %v1368 = vlog2.pop %v1367
    %v1369 = vmul.f32 %v1368, 0.6931472
    %v1370 = vsub.f32 %v1362, %v1369
    %1371 = vst.msk [vmem:[#allocation12] sm:$0x3] %vm1358, %v1370
    // Predicated region
    $region46: #{forward.1} parent=1 // pred_check
      _
    $region47: #{forward.1} parent=1 // pred_check_branch
      %1373 = sbr.rel (0) target = $region49
    $region48: #{forward.1} parent=1 // pred_region
      %s1375 = ssub.s32 32, 32
      %1376 = vsyncadd [#allocation9], %s1375
      %s1378 = sshll.u32 [#allocation12], 4
      %s1379 = int_to_ptr.vmem [resolvable:$true] %s1378
      %1381 = dma.vmem_to_hbm [thread:$0]  %s1379, 32, %s9, [#allocation9]
    $region49: #{forward.1} parent=1 // pred_fallthru
      _
    // Predicated region
    $region50: #{forward.1} parent=1 // pred_check
      _
    $region51: #{forward.1} parent=1 // pred_check_branch
      %1383 = sbr.rel (0) target = $region53
    $region52: #{forward.1} parent=1 // pred_region
      %1384 = dma.done [#allocation9], 32
    $region53: #{forward.1} parent=1 // pred_fallthru
      _
    %1385 = vsyncpa [#allocation8], 1
    %1386 = vsyncpa [#allocation11], 1
    %1387 = vsyncpa [#allocation9], 1

</llo_original>
